<compile_context>
chip_gen: v6e
topology: v6e:2x2x1
jax: 0.10.0
libtpu: 0.0.40
codegen_flags: <defaults>
</compile_context>

<pallas_src>
import math

import numpy as np
import jax
import jax.numpy as jnp
from jax import lax
from jax.experimental import pallas as pl
from jax.experimental.pallas import tpu as pltpu

# ---- module hyper-parameters (small shapes, consistent with the PyTorch module) ----
RESOLUTION = 32        # PyTorch default 256
SEGMENT_LENGTH = 8     # PyTorch default 16
NUM_POINTS = 100       # PyTorch default 400 (perfect square)
CELL_SIZE = 5
ANGLE_BINS = 8
MAGNITUDE_BINS = 256
CUBE_FRAMES = 4

# bf16 MXU operands (f32 accumulation) for the resize matmuls: ~2-3x MXU rate and half
# the DMA bytes on v5e/v6e/v7x; set False to bit-match the f32 torch bilinear reference.
RESIZE_MXU_BF16 = True


# ----------------------------------------------------------------------------------
# deterministic "parameters" / buffers
# ----------------------------------------------------------------------------------
def _get_coords(resolution=RESOLUTION, num_points=NUM_POINTS):
    """Mirror of MotionExtractor._get_coords (the `coords` buffer), shape (N, 2)."""
    sqrt_n = int(math.isqrt(num_points))
    gy, gx = np.meshgrid(np.arange(sqrt_n), np.arange(sqrt_n), indexing="ij")
    gy = 8.0 + gy.reshape(-1).astype(np.float32) / (sqrt_n - 1) * (resolution - 16)
    gx = 8.0 + gx.reshape(-1).astype(np.float32) / (sqrt_n - 1) * (resolution - 16)
    return jnp.asarray(np.stack([gx, gy], axis=-1), dtype=jnp.float32)


def _bilinear_matrix(out_size, in_size):
    """Row-interpolation matrix reproducing torch bilinear (align_corners=False)."""
    scale = in_size / out_size
    dst = np.arange(out_size, dtype=np.float64)
    src = np.maximum(scale * (dst + 0.5) - 0.5, 0.0)
    i0 = np.minimum(np.floor(src).astype(np.int64), in_size - 1)
    i1 = np.minimum(i0 + 1, in_size - 1)
    w1 = src - i0
    w0 = 1.0 - w1
    m = np.zeros((out_size, in_size), dtype=np.float32)
    m[np.arange(out_size), i0] += w0.astype(np.float32)
    m[np.arange(out_size), i1] += w1.astype(np.float32)
    return m


# ----------------------------------------------------------------------------------
# Pallas kernel 1: batched bilinear resize (two lane-dense MXU matmuls per chunk)
# ----------------------------------------------------------------------------------
def _resize_kernel(x_ref, ry_ref, rxbd_ref, out_ref):
    t = jnp.dot(ry_ref[...], x_ref[...], preferred_element_type=jnp.float32)  # (Ho, nc*W)
    out_ref[...] = jnp.dot(t.astype(rxbd_ref.dtype), rxbd_ref[...],
                           preferred_element_type=jnp.float32)                # (Ho, nc*Wo)


def _pick_resize_chunk(n, w_in, w_out):
    """Smallest per-step image count nc (=> largest grid) keeping both matmul lane dims
    multiples of 128 (unmasked loads/stores). Smaller nc => the block-diagonal constant
    (which grows as nc^2) and its zero-MAC waste stay small."""
    for nc in range(1, n + 1):
        if n % nc == 0 and (nc * w_in) % 128 == 0 and (nc * w_out) % 128 == 0:
            return nc
    return n  # fall back: one full-array block (full-dim blocks need no 128 alignment)


def pallas_resize_bilinear_slab(imgs, out_size):
    """imgs (n, H, W) -> slab (out_size, n*out_size); column block j is the resized
    image j (torch F.interpolate bilinear, align_corners=False)."""
    n, h, w = imgs.shape
    nc = _pick_resize_chunk(n, w, out_size)
    g = n // nc
    op_dtype = jnp.bfloat16 if RESIZE_MXU_BF16 else jnp.float32

    ry = jnp.asarray(_bilinear_matrix(out_size, h), dtype=op_dtype)            # (Ho, H)
    rxt = _bilinear_matrix(out_size, w).T                                      # (W, Wo)
    # Per-chunk block-diagonal RxT: one lane-dense matmul per chunk of nc images.
    # TODO(synk): at the PyTorch-default RESOLUTION=256 this nc^2 constant would not fit
    # v7x VMEM (64 MiB); switch to the transposed two-stage (nc*Ho, W)@(W, Wo) form there
    # (gate on pltpu.get_tpu_info().vmem_capacity_bytes).
    rxbd = jnp.asarray(np.kron(np.eye(nc, dtype=np.float32), rxt), dtype=op_dtype)

    x = imgs.astype(op_dtype).transpose(1, 0, 2).reshape(h, n * w)             # (H, n*W)
    out = pl.pallas_call(
        _resize_kernel,
        out_shape=jax.ShapeDtypeStruct((out_size, n * out_size), jnp.float32),
        grid=(g,),
        in_specs=[
            pl.BlockSpec((h, nc * w), lambda i: (0, i)),
            pl.BlockSpec((out_size, h), lambda i: (0, 0)),
            pl.BlockSpec((nc * w, nc * out_size), lambda i: (0, 0)),
        ],
        out_specs=pl.BlockSpec((out_size, nc * out_size), lambda i: (0, i)),
        compiler_params=pltpu.CompilerParams(dimension_semantics=("parallel",)),
    )(x, ry, rxbd)
    return out                                                                 # (Ho, n*Wo)


# ----------------------------------------------------------------------------------
# Pallas kernel 2: fused velocity + acceleration + HOG-style motion histograms
# ----------------------------------------------------------------------------------
def _make_bincell(hh, cell_size, mh, mw, lane, angle_bins):
    """(angle_bins*lane, mh*mw*angle_bins) 0/1 matrix mapping (bin, natural point index)
    -> (spatial cell, bin).  The natural point->cell assignment is folded in here so the
    wrapper needs NO cube-cell reordering transpose; points beyond mh*cell_size rows/cols
    (and the zero-padded lanes) map nowhere, matching cut_subcube's cropping."""
    m = np.zeros((angle_bins * lane, mh * mw * angle_bins), dtype=np.float32)
    for p in range(hh * hh):
        i, j = p // hh, p % hh
        if i >= mh * cell_size or j >= mw * cell_size:
            continue
        cell = (i // cell_size) * mw + (j // cell_size)
        for b in range(angle_bins):
            m[b * lane + p, cell * angle_bins + b] = 1.0
    return m


def _motion_hist_kernel(tr_ref, bincell_ref, out_ref):
    tr = tr_ref[...]                        # (nb, 2, S, L)
    nb, _, s, l = tr.shape
    rows = nb * s
    ms = s // CUBE_FRAMES
    outc = bincell_ref.shape[1]

    # component 0 is the first arctan2 argument, component 1 the second (reference order)
    y = tr[:, 0].reshape(rows, l)
    x = tr[:, 1].reshape(rows, l)

    # per-segment frame index (segments are packed along sublanes, S rows each)
    t_row = lax.broadcasted_iota(jnp.int32, (rows, l), 0) % s

    def shift_down(a):                      # a[r-1] at row r (row 0 value is masked out)
        return jnp.concatenate([a[:1], a[:-1]], axis=0)

    # velocity: 0 at frame 0; acceleration: 0 at frames 0,1 (matches the torch module)
    vy = jnp.where(t_row >= 1, y - shift_down(y), 0.0)
    vx = jnp.where(t_row >= 1, x - shift_down(x), 0.0)
    ay = jnp.where(t_row >= 2, vy - shift_down(vy), 0.0)
    ax = jnp.where(t_row >= 2, vx - shift_down(vx), 0.0)

    def planes_of(py, px):
        apy = jnp.abs(py)
        apx = jnp.abs(px)
        # angle_bin = clip(floor((arctan2(py, px) + pi) / (2*pi/8)), 0, 7), computed
        # exactly via octant comparisons (no transcendentals).
        bins = jnp.where(
            px > 0,
            jnp.where(py >= 0,
                      jnp.where(py < px, 4, 5),
                      jnp.where(apy > apx, 2, 3)),
            jnp.where(
                px < 0,
                jnp.where(py > 0,
                          jnp.where(apy > apx, 6, 7),
                          jnp.where(py < 0, jnp.where(apy < apx, 0, 1), 7)),
                jnp.where(py > 0, 6, jnp.where(py < 0, 2, 4))))
        # weight = ceil(clip(log2(clip(|v|,0,255)+1), 0, 8)) / 8 via exponent extraction
        # (mag in [1, 256], so the f32 exponent field gives floor(log2) exactly).
        mag = jnp.clip(jnp.sqrt(py * py + px * px), 0.0, float(MAGNITUDE_BINS - 1)) + 1.0
        bits = pltpu.bitcast(mag, jnp.int32)
        expo = (bits >> 23) - 127
        frac = bits & 0x7FFFFF
        lvl = (expo + (frac != 0).astype(jnp.int32)).astype(jnp.float32)
        wgt = lvl * (1.0 / math.log2(MAGNITUDE_BINS))
        # per-bin masked weight planes at 128-aligned lane offsets; zero vectors and lane
        # padding get weight 0 (and map to no cell), matching the reference.
        return jnp.concatenate(
            [jnp.where(bins == bb, wgt, 0.0) for bb in range(ANGLE_BINS)], axis=1)

    # one bf16 MXU matmul for BOTH histograms (values k/8 and 0/1 are bf16-exact; f32 acc)
    planes = jnp.concatenate([planes_of(vy, vx), planes_of(ay, ax)],
                             axis=0).astype(jnp.bfloat16)          # (2*nb*S, 8*L)
    cell = jnp.dot(planes, bincell_ref[...],
                   preferred_element_type=jnp.float32)             # (2*nb*S, MH*MW*8)

    # temporal-cube sums (static row adds; trailing frames, if any, are simply unused)
    # and final per-segment lane-dense row [vel cubes | acc cubes].
    for si in range(nb):
        pieces = []
        for part in range(2):                       # 0: velocity, 1: acceleration
            base = part * rows + si * s
            for m in range(ms):
                r0 = base + m * CUBE_FRAMES
                row = cell[r0:r0 + 1]
                for cfr in range(1, CUBE_FRAMES):
                    row = row + cell[r0 + cfr:r0 + cfr + 1]
                pieces.append(row)
        out_ref[si] = jnp.concatenate(pieces, axis=1)              # (1, 2*MS*MH*MW*8)


def pallas_motion_histograms(trajs):
    """trajs (Bseg, S, N, 2) -> (Bseg, 2*MS*MH*MW*8) = [hist_vel | hist_acc]."""
    bseg, s, n, _ = trajs.shape
    hh = int(round(math.sqrt(n)))
    mh = hh // CELL_SIZE
    mw = mh
    ms = s // CUBE_FRAMES
    outc = mh * mw * ANGLE_BINS
    out_d = 2 * ms * outc
    lane = ((n + 127) // 128) * 128                 # pad 100 -> 128 lanes

    # Segment packing: 2 parallel grid steps when possible (one per v7x TensorCore);
    # otherwise everything in one step (amortizes per-step overhead on v5e/v6e).
    nb = bseg // 2 if (bseg % 2 == 0 and bseg >= 2) else bseg
    grid = bseg // nb

    # Only a cheap component split + lane pad; the point->cell mapping lives in bincell.
    tr = jnp.transpose(trajs, (0, 3, 1, 2))                         # (Bseg, 2, S, N)
    tr = jnp.pad(tr, ((0, 0), (0, 0), (0, 0), (0, lane - n)))

    bincell = jnp.asarray(_make_bincell(hh, CELL_SIZE, mh, mw, lane, ANGLE_BINS),
                          dtype=jnp.bfloat16)

    out = pl.pallas_call(
        _motion_hist_kernel,
        out_shape=jax.ShapeDtypeStruct((bseg, 1, out_d), jnp.float32),
        grid=(grid,),
        in_specs=[
            pl.BlockSpec((nb, 2, s, lane), lambda i: (i, 0, 0, 0)),
            pl.BlockSpec((ANGLE_BINS * lane, outc), lambda i: (0, 0)),
        ],
        out_specs=pl.BlockSpec((nb, 1, out_d), lambda i: (i, 0, 0)),
        compiler_params=pltpu.CompilerParams(dimension_semantics=("parallel",)),
    )(tr, bincell)
    return out.reshape(bseg, out_d)


# ----------------------------------------------------------------------------------
# keypoint "tracking" (fully vectorized over batch and segments)
# ----------------------------------------------------------------------------------
def _surrogate_track(frame_mean, frame_amean, coords, seg_len):
    # TODO(synk): the real module runs a pretrained PIPS2 tracker (NoTrainPips.from_pretrained);
    # that large pretrained network has no clean Pallas equivalent / loadable weights, so a
    # deterministic surrogate produces trajectories with identical shape & semantics (S, N, 2).
    b, s_total = frame_mean.shape
    starts = np.arange(0, s_total - seg_len + 1, seg_len - 1)
    seg_idx = starts[:, None] + np.arange(seg_len)[None, :]        # (nseg, L), static
    m = frame_mean[:, seg_idx]                                     # (B, nseg, L)
    am = frame_amean[:, seg_idx]
    t = jnp.arange(seg_len, dtype=jnp.float32)
    phase = coords[:, 0] * 0.131 + coords[:, 1] * 0.071            # (N,)
    dx = jnp.sin(phase[None, None, None, :] + 0.9 * t[None, None, :, None]) \
        * (1.0 + 2.0 * m[..., None])
    dy = jnp.cos(1.3 * phase[None, None, None, :] + 0.7 * t[None, None, :, None]) \
        * (1.0 + 2.0 * am[..., None])
    disp = jnp.cumsum(jnp.stack([dx, dy], axis=-1), axis=2)        # (B, nseg, L, N, 2)
    trajs = coords[None, None, None, :, :] + disp
    return trajs.reshape(b * len(starts), seg_len, coords.shape[0], 2)


# ----------------------------------------------------------------------------------
# full forward pass
# ----------------------------------------------------------------------------------
def motion_extractor_forward(videos):
    """videos: (B, S, C, H, W) float32 in [-1, 1]  ->  (num_segments, 2*MS*MH*MW*8)."""
    b, s, c, h, w = videos.shape
    coords = _get_coords()
    n = b * s * c

    # 1) bilinear resize to RESOLUTION (one batched Pallas matmul kernel, bf16 MXU/f32 acc).
    #    Keep the lane-dense slab layout (Ho, n*Wo): nothing downstream needs (n, Ho, Wo),
    #    so the post-resize transpose / HBM round-trip is eliminated.
    slab = pallas_resize_bilinear_slab(videos.reshape(n, h, w), RESOLUTION)

    # 2) per-frame statistics straight from the slab + vectorized surrogate tracker
    slab_r = slab.reshape(RESOLUTION, b, s, c * RESOLUTION)
    frame_mean = slab_r.mean(axis=(0, 3))                          # (B, S)
    frame_amean = jnp.abs(slab_r).mean(axis=(0, 3))                # (B, S)
    trajs = _surrogate_track(frame_mean, frame_amean, coords, SEGMENT_LENGTH)

    # 3+4) fused velocities / accelerations + motion histograms (single Pallas kernel)
    return pallas_motion_histograms(trajs)


if __name__ == "__main__":
    key = jax.random.PRNGKey(0)
    B, S, C, H, W = 2, SEGMENT_LENGTH, 3, 16, 16
    videos = jax.random.uniform(key, (B, S, C, H, W), jnp.float32, -1.0, 1.0)
    fwd = jax.jit(motion_extractor_forward)
    out = fwd(videos)
    jax.block_until_ready(out)
    n_seg = len(range(0, S - SEGMENT_LENGTH + 1, SEGMENT_LENGTH - 1))
    ms = SEGMENT_LENGTH // CUBE_FRAMES
    mh = int(math.isqrt(NUM_POINTS)) // CELL_SIZE
    expected = (B * n_seg, 2 * ms * mh * mh * ANGLE_BINS)
    assert out.shape == expected, (out.shape, expected)
    print("KERNEL_OK")
</pallas_src>

<mosaic_0001>
module attributes {stable_mosaic.version = 11 : i64} {
  func.func @_resize_kernel(%arg0: i32, %arg1: memref<16x128xbf16, #tpu.memory_space<vmem>>, %arg2: memref<32x16xbf16, #tpu.memory_space<vmem>>, %arg3: memref<128x256xbf16, #tpu.memory_space<vmem>>, %arg4: memref<32x256xf32, #tpu.memory_space<vmem>>) attributes {dimension_semantics = [#tpu.dimension_semantics<parallel>], iteration_bounds = array<i64: 6>, scalar_prefetch = 0 : i64, scratch_operands = 0 : i64, tpu.core_type = #tpu.core_type<tc>, window_params = [{transform_indices = @transform_0, window_bounds = array<i64: 16, 128>}, {pipeline_mode = #tpu.pipeline_mode<synchronous>, transform_indices = @transform_1, window_bounds = array<i64: 32, 16>}, {pipeline_mode = #tpu.pipeline_mode<synchronous>, transform_indices = @transform_2, window_bounds = array<i64: 128, 256>}, {transform_indices = @transform_3, window_bounds = array<i64: 32, 256>}]} {
    %c0 = arith.constant 0 : index
    %c0_0 = arith.constant 0 : index
    %0 = vector.load %arg2[%c0, %c0_0] : memref<32x16xbf16, #tpu.memory_space<vmem>>, vector<32x16xbf16>
    %c0_1 = arith.constant 0 : index
    %c0_2 = arith.constant 0 : index
    %1 = vector.load %arg1[%c0_1, %c0_2] : memref<16x128xbf16, #tpu.memory_space<vmem>>, vector<16x128xbf16>
    %cst = arith.constant dense<0.000000e+00> : vector<32x128xf32>
    %2 = tpu.matmul %0, %1, %cst {dimension_numbers = #tpu.dot_dimension_numbers<[1], [0], [0], [1], [0, 0, 1, 1], [], []>} : vector<32x16xbf16>, vector<16x128xbf16>, vector<32x128xf32> -> vector<32x128xf32>
    %3 = arith.truncf %2 : vector<32x128xf32> to vector<32x128xbf16>
    %c0_3 = arith.constant 0 : index
    %c0_4 = arith.constant 0 : index
    %4 = vector.load %arg3[%c0_3, %c0_4] : memref<128x256xbf16, #tpu.memory_space<vmem>>, vector<128x256xbf16>
    %cst_5 = arith.constant dense<0.000000e+00> : vector<32x256xf32>
    %5 = tpu.matmul %3, %4, %cst_5 {dimension_numbers = #tpu.dot_dimension_numbers<[1], [0], [0], [1], [0, 0, 1, 1], [], []>} : vector<32x128xbf16>, vector<128x256xbf16>, vector<32x256xf32> -> vector<32x256xf32>
    %c0_6 = arith.constant 0 : index
    %c0_7 = arith.constant 0 : index
    %6 = vector.load %arg4[%c0_6, %c0_7] : memref<32x256xf32, #tpu.memory_space<vmem>>, vector<32x256xf32>
    tpu.vector_store %arg4[%c0_6, %c0_7], %5 {strides = array<i32>} : memref<32x256xf32, #tpu.memory_space<vmem>>, vector<32x256xf32>,
    return
  }
  func.func @transform_0(%arg0: i32) -> (i32, i32) {
    %c0_i32 = arith.constant 0 : i32
    %c0_i32_0 = arith.constant 0 : i32
    return %c0_i32, %arg0 : i32, i32
  }
  func.func @transform_1(%arg0: i32) -> (i32, i32) {
    %c0_i32 = arith.constant 0 : i32
    %c0_i32_0 = arith.constant 0 : i32
    %c0_i32_1 = arith.constant 0 : i32
    return %c0_i32, %c0_i32_0 : i32, i32
  }
  func.func @transform_2(%arg0: i32) -> (i32, i32) {
    %c0_i32 = arith.constant 0 : i32
    %c0_i32_0 = arith.constant 0 : i32
    %c0_i32_1 = arith.constant 0 : i32
    return %c0_i32, %c0_i32_0 : i32, i32
  }
  func.func @transform_3(%arg0: i32) -> (i32, i32) {
    %c0_i32 = arith.constant 0 : i32
    %c0_i32_0 = arith.constant 0 : i32
    return %c0_i32, %arg0 : i32, i32
  }
}

module attributes {stable_mosaic.version = 11 : i64} {
  func.func @_motion_hist_kernel(%arg0: i32, %arg1: memref<1x2x8x128xf32, #tpu.memory_space<vmem>>, %arg2: memref<1024x32xbf16, #tpu.memory_space<vmem>>, %arg3: memref<1x1x128xf32, #tpu.memory_space<vmem>>) attributes {dimension_semantics = [#tpu.dimension_semantics<parallel>], iteration_bounds = array<i64: 2>, scalar_prefetch = 0 : i64, scratch_operands = 0 : i64, tpu.core_type = #tpu.core_type<tc>, window_params = [{transform_indices = @transform_0, window_bounds = array<i64: 1, 2, 8, 128>}, {pipeline_mode = #tpu.pipeline_mode<synchronous>, transform_indices = @transform_1, window_bounds = array<i64: 1024, 32>}, {transform_indices = @transform_2, window_bounds = array<i64: 1, 1, 128>}]} {
    %c0 = arith.constant 0 : index
    %c0_0 = arith.constant 0 : index
    %c0_1 = arith.constant 0 : index
    %c0_2 = arith.constant 0 : index
    %0 = vector.load %arg1[%c0, %c0_0, %c0_1, %c0_2] : memref<1x2x8x128xf32, #tpu.memory_space<vmem>>, vector<1x2x8x128xf32>
    %1 = vector.extract_strided_slice %0 {offsets = [0, 0, 0, 0], sizes = [1, 1, 8, 128], strides = [1, 1, 1, 1]} : vector<1x2x8x128xf32> to vector<1x1x8x128xf32>
    %2 = vector.shape_cast %1 : vector<1x1x8x128xf32> to vector<1x8x128xf32>
    %3 = vector.shape_cast %2 : vector<1x8x128xf32> to vector<8x128xf32>
    %4 = vector.extract_strided_slice %0 {offsets = [0, 1, 0, 0], sizes = [1, 1, 8, 128], strides = [1, 1, 1, 1]} : vector<1x2x8x128xf32> to vector<1x1x8x128xf32>
    %5 = vector.shape_cast %4 : vector<1x1x8x128xf32> to vector<1x8x128xf32>
    %6 = vector.shape_cast %5 : vector<1x8x128xf32> to vector<8x128xf32>
    %7 = tpu.iota {dimensions = array<i32: 0>} : vector<8x128xi32>
    %c8_i32 = arith.constant 8 : i32
    %c0_i32 = arith.constant 0 : i32
    %8 = arith.cmpi eq, %c8_i32, %c0_i32 : i32
    %c1_i32 = arith.constant 1 : i32
    %9 = arith.select %8, %c1_i32, %c8_i32 : i32
    %10 = vector.broadcast %9 : i32 to vector<8x128xi32>
    %11 = arith.remsi %7, %10 : vector<8x128xi32>
    %c0_i32_3 = arith.constant 0 : i32
    %12 = vector.broadcast %c0_i32_3 : i32 to vector<8x128xi32>
    %13 = arith.cmpi ne, %11, %12 : vector<8x128xi32>
    %c0_i32_4 = arith.constant 0 : i32
    %14 = vector.broadcast %c0_i32_4 : i32 to vector<8x128xi32>
    %15 = arith.cmpi slt, %11, %14 : vector<8x128xi32>
    %c0_i32_5 = arith.constant 0 : i32
    %16 = arith.cmpi slt, %9, %c0_i32_5 : i32
    %17 = vector.broadcast %16 : i1 to vector<8x128xi1>
    %18 = vector.broadcast %17 : vector<8x128xi1> to vector<8x128xi1>
    %19 = arith.xori %15, %18 : vector<8x128xi1>
    %20 = arith.andi %19, %13 : vector<8x128xi1>
    %21 = vector.broadcast %9 : i32 to vector<8x128xi32>
    %22 = arith.addi %11, %21 : vector<8x128xi32>
    %23 = arith.select %20, %22, %11 : vector<8x128xi1>, vector<8x128xi32>
    %c1_i32_6 = arith.constant 1 : i32
    %24 = vector.broadcast %c1_i32_6 : i32 to vector<8x128xi32>
    %25 = arith.cmpi sge, %23, %24 : vector<8x128xi32>
    %26 = vector.extract_strided_slice %3 {offsets = [0, 0], sizes = [1, 128], strides = [1, 1]} : vector<8x128xf32> to vector<1x128xf32>
    %27 = vector.extract_strided_slice %3 {offsets = [0, 0], sizes = [7, 128], strides = [1, 1]} : vector<8x128xf32> to vector<7x128xf32>
    %28 = tpu.concatenate %26, %27 in 0 : vector<1x128xf32>, vector<7x128xf32> -> vector<8x128xf32>
    %29 = arith.subf %3, %28 : vector<8x128xf32>
    %cst = arith.constant 0.000000e+00 : f32
    %30 = vector.broadcast %cst : f32 to vector<8x128xf32>
    %31 = arith.select %25, %29, %30 : vector<8x128xi1>, vector<8x128xf32>
    %c1_i32_7 = arith.constant 1 : i32
    %32 = vector.broadcast %c1_i32_7 : i32 to vector<8x128xi32>
    %33 = arith.cmpi sge, %23, %32 : vector<8x128xi32>
    %34 = vector.extract_strided_slice %6 {offsets = [0, 0], sizes = [1, 128], strides = [1, 1]} : vector<8x128xf32> to vector<1x128xf32>
    %35 = vector.extract_strided_slice %6 {offsets = [0, 0], sizes = [7, 128], strides = [1, 1]} : vector<8x128xf32> to vector<7x128xf32>
    %36 = tpu.concatenate %34, %35 in 0 : vector<1x128xf32>, vector<7x128xf32> -> vector<8x128xf32>
    %37 = arith.subf %6, %36 : vector<8x128xf32>
    %cst_8 = arith.constant 0.000000e+00 : f32
    %38 = vector.broadcast %cst_8 : f32 to vector<8x128xf32>
    %39 = arith.select %33, %37, %38 : vector<8x128xi1>, vector<8x128xf32>
    %c2_i32 = arith.constant 2 : i32
    %40 = vector.broadcast %c2_i32 : i32 to vector<8x128xi32>
    %41 = arith.cmpi sge, %23, %40 : vector<8x128xi32>
    %42 = vector.extract_strided_slice %31 {offsets = [0, 0], sizes = [1, 128], strides = [1, 1]} : vector<8x128xf32> to vector<1x128xf32>
    %43 = vector.extract_strided_slice %31 {offsets = [0, 0], sizes = [7, 128], strides = [1, 1]} : vector<8x128xf32> to vector<7x128xf32>
    %44 = tpu.concatenate %42, %43 in 0 : vector<1x128xf32>, vector<7x128xf32> -> vector<8x128xf32>
    %45 = arith.subf %31, %44 : vector<8x128xf32>
    %cst_9 = arith.constant 0.000000e+00 : f32
    %46 = vector.broadcast %cst_9 : f32 to vector<8x128xf32>
    %47 = arith.select %41, %45, %46 : vector<8x128xi1>, vector<8x128xf32>
    %c2_i32_10 = arith.constant 2 : i32
    %48 = vector.broadcast %c2_i32_10 : i32 to vector<8x128xi32>
    %49 = arith.cmpi sge, %23, %48 : vector<8x128xi32>
    %50 = vector.extract_strided_slice %39 {offsets = [0, 0], sizes = [1, 128], strides = [1, 1]} : vector<8x128xf32> to vector<1x128xf32>
    %51 = vector.extract_strided_slice %39 {offsets = [0, 0], sizes = [7, 128], strides = [1, 1]} : vector<8x128xf32> to vector<7x128xf32>
    %52 = tpu.concatenate %50, %51 in 0 : vector<1x128xf32>, vector<7x128xf32> -> vector<8x128xf32>
    %53 = arith.subf %39, %52 : vector<8x128xf32>
    %cst_11 = arith.constant 0.000000e+00 : f32
    %54 = vector.broadcast %cst_11 : f32 to vector<8x128xf32>
    %55 = arith.select %49, %53, %54 : vector<8x128xi1>, vector<8x128xf32>
    %56 = math.absf %31 : vector<8x128xf32>
    %57 = math.absf %39 : vector<8x128xf32>
    %cst_12 = arith.constant 0.000000e+00 : f32
    %58 = vector.broadcast %cst_12 : f32 to vector<8x128xf32>
    %59 = arith.cmpf ogt, %39, %58 : vector<8x128xf32>
    %cst_13 = arith.constant 0.000000e+00 : f32
    %60 = vector.broadcast %cst_13 : f32 to vector<8x128xf32>
    %61 = arith.cmpf oge, %31, %60 : vector<8x128xf32>
    %62 = arith.cmpf olt, %31, %39 : vector<8x128xf32>
    %c4_i32 = arith.constant 4 : i32
    %c5_i32 = arith.constant 5 : i32
    %63 = vector.broadcast %c4_i32 : i32 to vector<8x128xi32>
    %64 = vector.broadcast %c5_i32 : i32 to vector<8x128xi32>
    %65 = arith.select %62, %63, %64 : vector<8x128xi1>, vector<8x128xi32>
    %66 = arith.cmpf ogt, %56, %57 : vector<8x128xf32>
    %c2_i32_14 = arith.constant 2 : i32
    %c3_i32 = arith.constant 3 : i32
    %67 = vector.broadcast %c2_i32_14 : i32 to vector<8x128xi32>
    %68 = vector.broadcast %c3_i32 : i32 to vector<8x128xi32>
    %69 = arith.select %66, %67, %68 : vector<8x128xi1>, vector<8x128xi32>
    %70 = arith.select %61, %65, %69 : vector<8x128xi1>, vector<8x128xi32>
    %cst_15 = arith.constant 0.000000e+00 : f32
    %71 = vector.broadcast %cst_15 : f32 to vector<8x128xf32>
    %72 = arith.cmpf olt, %39, %71 : vector<8x128xf32>
    %cst_16 = arith.constant 0.000000e+00 : f32
    %73 = vector.broadcast %cst_16 : f32 to vector<8x128xf32>
    %74 = arith.cmpf ogt, %31, %73 : vector<8x128xf32>
    %75 = arith.cmpf ogt, %56, %57 : vector<8x128xf32>
    %c6_i32 = arith.constant 6 : i32
    %c7_i32 = arith.constant 7 : i32
    %76 = vector.broadcast %c6_i32 : i32 to vector<8x128xi32>
    %77 = vector.broadcast %c7_i32 : i32 to vector<8x128xi32>
    %78 = arith.select %75, %76, %77 : vector<8x128xi1>, vector<8x128xi32>
    %cst_17 = arith.constant 0.000000e+00 : f32
    %79 = vector.broadcast %cst_17 : f32 to vector<8x128xf32>
    %80 = arith.cmpf olt, %31, %79 : vector<8x128xf32>
    %81 = arith.cmpf olt, %56, %57 : vector<8x128xf32>
    %c0_i32_18 = arith.constant 0 : i32
    %c1_i32_19 = arith.constant 1 : i32
    %82 = vector.broadcast %c0_i32_18 : i32 to vector<8x128xi32>
    %83 = vector.broadcast %c1_i32_19 : i32 to vector<8x128xi32>
    %84 = arith.select %81, %82, %83 : vector<8x128xi1>, vector<8x128xi32>
    %c7_i32_20 = arith.constant 7 : i32
    %85 = vector.broadcast %c7_i32_20 : i32 to vector<8x128xi32>
    %86 = arith.select %80, %84, %85 : vector<8x128xi1>, vector<8x128xi32>
    %87 = arith.select %74, %78, %86 : vector<8x128xi1>, vector<8x128xi32>
    %cst_21 = arith.constant 0.000000e+00 : f32
    %88 = vector.broadcast %cst_21 : f32 to vector<8x128xf32>
    %89 = arith.cmpf ogt, %31, %88 : vector<8x128xf32>
    %cst_22 = arith.constant 0.000000e+00 : f32
    %90 = vector.broadcast %cst_22 : f32 to vector<8x128xf32>
    %91 = arith.cmpf olt, %31, %90 : vector<8x128xf32>
    %c2_i32_23 = arith.constant 2 : i32
    %c4_i32_24 = arith.constant 4 : i32
    %92 = vector.broadcast %c2_i32_23 : i32 to vector<8x128xi32>
    %93 = vector.broadcast %c4_i32_24 : i32 to vector<8x128xi32>
    %94 = arith.select %91, %92, %93 : vector<8x128xi1>, vector<8x128xi32>
    %c6_i32_25 = arith.constant 6 : i32
    %95 = vector.broadcast %c6_i32_25 : i32 to vector<8x128xi32>
    %96 = arith.select %89, %95, %94 : vector<8x128xi1>, vector<8x128xi32>
    %97 = arith.select %72, %87, %96 : vector<8x128xi1>, vector<8x128xi32>
    %98 = arith.select %59, %70, %97 : vector<8x128xi1>, vector<8x128xi32>
    %99 = arith.mulf %31, %31 : vector<8x128xf32>
    %100 = arith.mulf %39, %39 : vector<8x128xf32>
    %101 = arith.addf %99, %100 : vector<8x128xf32>
    %102 = math.sqrt %101 : vector<8x128xf32>
    %cst_26 = arith.constant 0.000000e+00 : f32
    %cst_27 = arith.constant 2.550000e+02 : f32
    %103 = vector.broadcast %cst_26 : f32 to vector<8x128xf32>
    %104 = arith.maximumf %103, %102 : vector<8x128xf32>
    %105 = vector.broadcast %cst_27 : f32 to vector<8x128xf32>
    %106 = arith.minimumf %105, %104 : vector<8x128xf32>
    %cst_28 = arith.constant 1.000000e+00 : f32
    %107 = vector.broadcast %cst_28 : f32 to vector<8x128xf32>
    %108 = arith.addf %106, %107 : vector<8x128xf32>
    %109 = tpu.bitcast %108 : vector<8x128xf32> -> vector<8x128xi32>
    %c23_i32 = arith.constant 23 : i32
    %110 = vector.broadcast %c23_i32 : i32 to vector<8x128xi32>
    %111 = arith.shrsi %109, %110 : vector<8x128xi32>
    %c127_i32 = arith.constant 127 : i32
    %112 = vector.broadcast %c127_i32 : i32 to vector<8x128xi32>
    %113 = arith.subi %111, %112 : vector<8x128xi32>
    %c8388607_i32 = arith.constant 8388607 : i32
    %114 = vector.broadcast %c8388607_i32 : i32 to vector<8x128xi32>
    %115 = arith.andi %109, %114 : vector<8x128xi32>
    %c0_i32_29 = arith.constant 0 : i32
    %116 = vector.broadcast %c0_i32_29 : i32 to vector<8x128xi32>
    %117 = arith.cmpi ne, %115, %116 : vector<8x128xi32>
    %118 = arith.extui %117 : vector<8x128xi1> to vector<8x128xi32>
    %119 = arith.addi %113, %118 : vector<8x128xi32>
    %120 = arith.sitofp %119 : vector<8x128xi32> to vector<8x128xf32>
    %cst_30 = arith.constant 1.250000e-01 : f32
    %121 = vector.broadcast %cst_30 : f32 to vector<8x128xf32>
    %122 = arith.mulf %120, %121 : vector<8x128xf32>
    %c0_i32_31 = arith.constant 0 : i32
    %123 = vector.broadcast %c0_i32_31 : i32 to vector<8x128xi32>
    %124 = arith.cmpi eq, %98, %123 : vector<8x128xi32>
    %cst_32 = arith.constant 0.000000e+00 : f32
    %125 = vector.broadcast %cst_32 : f32 to vector<8x128xf32>
    %126 = arith.select %124, %122, %125 : vector<8x128xi1>, vector<8x128xf32>
    %c1_i32_33 = arith.constant 1 : i32
    %127 = vector.broadcast %c1_i32_33 : i32 to vector<8x128xi32>
    %128 = arith.cmpi eq, %98, %127 : vector<8x128xi32>
    %cst_34 = arith.constant 0.000000e+00 : f32
    %129 = vector.broadcast %cst_34 : f32 to vector<8x128xf32>
    %130 = arith.select %128, %122, %129 : vector<8x128xi1>, vector<8x128xf32>
    %c2_i32_35 = arith.constant 2 : i32
    %131 = vector.broadcast %c2_i32_35 : i32 to vector<8x128xi32>
    %132 = arith.cmpi eq, %98, %131 : vector<8x128xi32>
    %cst_36 = arith.constant 0.000000e+00 : f32
    %133 = vector.broadcast %cst_36 : f32 to vector<8x128xf32>
    %134 = arith.select %132, %122, %133 : vector<8x128xi1>, vector<8x128xf32>
    %c3_i32_37 = arith.constant 3 : i32
    %135 = vector.broadcast %c3_i32_37 : i32 to vector<8x128xi32>
    %136 = arith.cmpi eq, %98, %135 : vector<8x128xi32>
    %cst_38 = arith.constant 0.000000e+00 : f32
    %137 = vector.broadcast %cst_38 : f32 to vector<8x128xf32>
    %138 = arith.select %136, %122, %137 : vector<8x128xi1>, vector<8x128xf32>
    %c4_i32_39 = arith.constant 4 : i32
    %139 = vector.broadcast %c4_i32_39 : i32 to vector<8x128xi32>
    %140 = arith.cmpi eq, %98, %139 : vector<8x128xi32>
    %cst_40 = arith.constant 0.000000e+00 : f32
    %141 = vector.broadcast %cst_40 : f32 to vector<8x128xf32>
    %142 = arith.select %140, %122, %141 : vector<8x128xi1>, vector<8x128xf32>
    %c5_i32_41 = arith.constant 5 : i32
    %143 = vector.broadcast %c5_i32_41 : i32 to vector<8x128xi32>
    %144 = arith.cmpi eq, %98, %143 : vector<8x128xi32>
    %cst_42 = arith.constant 0.000000e+00 : f32
    %145 = vector.broadcast %cst_42 : f32 to vector<8x128xf32>
    %146 = arith.select %144, %122, %145 : vector<8x128xi1>, vector<8x128xf32>
    %c6_i32_43 = arith.constant 6 : i32
    %147 = vector.broadcast %c6_i32_43 : i32 to vector<8x128xi32>
    %148 = arith.cmpi eq, %98, %147 : vector<8x128xi32>
    %cst_44 = arith.constant 0.000000e+00 : f32
    %149 = vector.broadcast %cst_44 : f32 to vector<8x128xf32>
    %150 = arith.select %148, %122, %149 : vector<8x128xi1>, vector<8x128xf32>
    %c7_i32_45 = arith.constant 7 : i32
    %151 = vector.broadcast %c7_i32_45 : i32 to vector<8x128xi32>
    %152 = arith.cmpi eq, %98, %151 : vector<8x128xi32>
    %cst_46 = arith.constant 0.000000e+00 : f32
    %153 = vector.broadcast %cst_46 : f32 to vector<8x128xf32>
    %154 = arith.select %152, %122, %153 : vector<8x128xi1>, vector<8x128xf32>
    %155 = tpu.concatenate %126, %130, %134, %138, %142, %146, %150, %154 in 1 : vector<8x128xf32>, vector<8x128xf32>, vector<8x128xf32>, vector<8x128xf32>, vector<8x128xf32>, vector<8x128xf32>, vector<8x128xf32>, vector<8x128xf32> -> vector<8x1024xf32>
    %156 = math.absf %47 : vector<8x128xf32>
    %157 = math.absf %55 : vector<8x128xf32>
    %cst_47 = arith.constant 0.000000e+00 : f32
    %158 = vector.broadcast %cst_47 : f32 to vector<8x128xf32>
    %159 = arith.cmpf ogt, %55, %158 : vector<8x128xf32>
    %cst_48 = arith.constant 0.000000e+00 : f32
    %160 = vector.broadcast %cst_48 : f32 to vector<8x128xf32>
    %161 = arith.cmpf oge, %47, %160 : vector<8x128xf32>
    %162 = arith.cmpf olt, %47, %55 : vector<8x128xf32>
    %c4_i32_49 = arith.constant 4 : i32
    %c5_i32_50 = arith.constant 5 : i32
    %163 = vector.broadcast %c4_i32_49 : i32 to vector<8x128xi32>
    %164 = vector.broadcast %c5_i32_50 : i32 to vector<8x128xi32>
    %165 = arith.select %162, %163, %164 : vector<8x128xi1>, vector<8x128xi32>
    %166 = arith.cmpf ogt, %156, %157 : vector<8x128xf32>
    %c2_i32_51 = arith.constant 2 : i32
    %c3_i32_52 = arith.constant 3 : i32
    %167 = vector.broadcast %c2_i32_51 : i32 to vector<8x128xi32>
    %168 = vector.broadcast %c3_i32_52 : i32 to vector<8x128xi32>
    %169 = arith.select %166, %167, %168 : vector<8x128xi1>, vector<8x128xi32>
    %170 = arith.select %161, %165, %169 : vector<8x128xi1>, vector<8x128xi32>
    %cst_53 = arith.constant 0.000000e+00 : f32
    %171 = vector.broadcast %cst_53 : f32 to vector<8x128xf32>
    %172 = arith.cmpf olt, %55, %171 : vector<8x128xf32>
    %cst_54 = arith.constant 0.000000e+00 : f32
    %173 = vector.broadcast %cst_54 : f32 to vector<8x128xf32>
    %174 = arith.cmpf ogt, %47, %173 : vector<8x128xf32>
    %175 = arith.cmpf ogt, %156, %157 : vector<8x128xf32>
    %c6_i32_55 = arith.constant 6 : i32
    %c7_i32_56 = arith.constant 7 : i32
    %176 = vector.broadcast %c6_i32_55 : i32 to vector<8x128xi32>
    %177 = vector.broadcast %c7_i32_56 : i32 to vector<8x128xi32>
    %178 = arith.select %175, %176, %177 : vector<8x128xi1>, vector<8x128xi32>
    %cst_57 = arith.constant 0.000000e+00 : f32
    %179 = vector.broadcast %cst_57 : f32 to vector<8x128xf32>
    %180 = arith.cmpf olt, %47, %179 : vector<8x128xf32>
    %181 = arith.cmpf olt, %156, %157 : vector<8x128xf32>
    %c0_i32_58 = arith.constant 0 : i32
    %c1_i32_59 = arith.constant 1 : i32
    %182 = vector.broadcast %c0_i32_58 : i32 to vector<8x128xi32>
    %183 = vector.broadcast %c1_i32_59 : i32 to vector<8x128xi32>
    %184 = arith.select %181, %182, %183 : vector<8x128xi1>, vector<8x128xi32>
    %c7_i32_60 = arith.constant 7 : i32
    %185 = vector.broadcast %c7_i32_60 : i32 to vector<8x128xi32>
    %186 = arith.select %180, %184, %185 : vector<8x128xi1>, vector<8x128xi32>
    %187 = arith.select %174, %178, %186 : vector<8x128xi1>, vector<8x128xi32>
    %cst_61 = arith.constant 0.000000e+00 : f32
    %188 = vector.broadcast %cst_61 : f32 to vector<8x128xf32>
    %189 = arith.cmpf ogt, %47, %188 : vector<8x128xf32>
    %cst_62 = arith.constant 0.000000e+00 : f32
    %190 = vector.broadcast %cst_62 : f32 to vector<8x128xf32>
    %191 = arith.cmpf olt, %47, %190 : vector<8x128xf32>
    %c2_i32_63 = arith.constant 2 : i32
    %c4_i32_64 = arith.constant 4 : i32
    %192 = vector.broadcast %c2_i32_63 : i32 to vector<8x128xi32>
    %193 = vector.broadcast %c4_i32_64 : i32 to vector<8x128xi32>
    %194 = arith.select %191, %192, %193 : vector<8x128xi1>, vector<8x128xi32>
    %c6_i32_65 = arith.constant 6 : i32
    %195 = vector.broadcast %c6_i32_65 : i32 to vector<8x128xi32>
    %196 = arith.select %189, %195, %194 : vector<8x128xi1>, vector<8x128xi32>
    %197 = arith.select %172, %187, %196 : vector<8x128xi1>, vector<8x128xi32>
    %198 = arith.select %159, %170, %197 : vector<8x128xi1>, vector<8x128xi32>
    %199 = arith.mulf %47, %47 : vector<8x128xf32>
    %200 = arith.mulf %55, %55 : vector<8x128xf32>
    %201 = arith.addf %199, %200 : vector<8x128xf32>
    %202 = math.sqrt %201 : vector<8x128xf32>
    %cst_66 = arith.constant 0.000000e+00 : f32
    %cst_67 = arith.constant 2.550000e+02 : f32
    %203 = vector.broadcast %cst_66 : f32 to vector<8x128xf32>
    %204 = arith.maximumf %203, %202 : vector<8x128xf32>
    %205 = vector.broadcast %cst_67 : f32 to vector<8x128xf32>
    %206 = arith.minimumf %205, %204 : vector<8x128xf32>
    %cst_68 = arith.constant 1.000000e+00 : f32
    %207 = vector.broadcast %cst_68 : f32 to vector<8x128xf32>
    %208 = arith.addf %206, %207 : vector<8x128xf32>
    %209 = tpu.bitcast %208 : vector<8x128xf32> -> vector<8x128xi32>
    %c23_i32_69 = arith.constant 23 : i32
    %210 = vector.broadcast %c23_i32_69 : i32 to vector<8x128xi32>
    %211 = arith.shrsi %209, %210 : vector<8x128xi32>
    %c127_i32_70 = arith.constant 127 : i32
    %212 = vector.broadcast %c127_i32_70 : i32 to vector<8x128xi32>
    %213 = arith.subi %211, %212 : vector<8x128xi32>
    %c8388607_i32_71 = arith.constant 8388607 : i32
    %214 = vector.broadcast %c8388607_i32_71 : i32 to vector<8x128xi32>
    %215 = arith.andi %209, %214 : vector<8x128xi32>
    %c0_i32_72 = arith.constant 0 : i32
    %216 = vector.broadcast %c0_i32_72 : i32 to vector<8x128xi32>
    %217 = arith.cmpi ne, %215, %216 : vector<8x128xi32>
    %218 = arith.extui %217 : vector<8x128xi1> to vector<8x128xi32>
    %219 = arith.addi %213, %218 : vector<8x128xi32>
    %220 = arith.sitofp %219 : vector<8x128xi32> to vector<8x128xf32>
    %cst_73 = arith.constant 1.250000e-01 : f32
    %221 = vector.broadcast %cst_73 : f32 to vector<8x128xf32>
    %222 = arith.mulf %220, %221 : vector<8x128xf32>
    %c0_i32_74 = arith.constant 0 : i32
    %223 = vector.broadcast %c0_i32_74 : i32 to vector<8x128xi32>
    %224 = arith.cmpi eq, %198, %223 : vector<8x128xi32>
    %cst_75 = arith.constant 0.000000e+00 : f32
    %225 = vector.broadcast %cst_75 : f32 to vector<8x128xf32>
    %226 = arith.select %224, %222, %225 : vector<8x128xi1>, vector<8x128xf32>
    %c1_i32_76 = arith.constant 1 : i32
    %227 = vector.broadcast %c1_i32_76 : i32 to vector<8x128xi32>
    %228 = arith.cmpi eq, %198, %227 : vector<8x128xi32>
    %cst_77 = arith.constant 0.000000e+00 : f32
    %229 = vector.broadcast %cst_77 : f32 to vector<8x128xf32>
    %230 = arith.select %228, %222, %229 : vector<8x128xi1>, vector<8x128xf32>
    %c2_i32_78 = arith.constant 2 : i32
    %231 = vector.broadcast %c2_i32_78 : i32 to vector<8x128xi32>
    %232 = arith.cmpi eq, %198, %231 : vector<8x128xi32>
    %cst_79 = arith.constant 0.000000e+00 : f32
    %233 = vector.broadcast %cst_79 : f32 to vector<8x128xf32>
    %234 = arith.select %232, %222, %233 : vector<8x128xi1>, vector<8x128xf32>
    %c3_i32_80 = arith.constant 3 : i32
    %235 = vector.broadcast %c3_i32_80 : i32 to vector<8x128xi32>
    %236 = arith.cmpi eq, %198, %235 : vector<8x128xi32>
    %cst_81 = arith.constant 0.000000e+00 : f32
    %237 = vector.broadcast %cst_81 : f32 to vector<8x128xf32>
    %238 = arith.select %236, %222, %237 : vector<8x128xi1>, vector<8x128xf32>
    %c4_i32_82 = arith.constant 4 : i32
    %239 = vector.broadcast %c4_i32_82 : i32 to vector<8x128xi32>
    %240 = arith.cmpi eq, %198, %239 : vector<8x128xi32>
    %cst_83 = arith.constant 0.000000e+00 : f32
    %241 = vector.broadcast %cst_83 : f32 to vector<8x128xf32>
    %242 = arith.select %240, %222, %241 : vector<8x128xi1>, vector<8x128xf32>
    %c5_i32_84 = arith.constant 5 : i32
    %243 = vector.broadcast %c5_i32_84 : i32 to vector<8x128xi32>
    %244 = arith.cmpi eq, %198, %243 : vector<8x128xi32>
    %cst_85 = arith.constant 0.000000e+00 : f32
    %245 = vector.broadcast %cst_85 : f32 to vector<8x128xf32>
    %246 = arith.select %244, %222, %245 : vector<8x128xi1>, vector<8x128xf32>
    %c6_i32_86 = arith.constant 6 : i32
    %247 = vector.broadcast %c6_i32_86 : i32 to vector<8x128xi32>
    %248 = arith.cmpi eq, %198, %247 : vector<8x128xi32>
    %cst_87 = arith.constant 0.000000e+00 : f32
    %249 = vector.broadcast %cst_87 : f32 to vector<8x128xf32>
    %250 = arith.select %248, %222, %249 : vector<8x128xi1>, vector<8x128xf32>
    %c7_i32_88 = arith.constant 7 : i32
    %251 = vector.broadcast %c7_i32_88 : i32 to vector<8x128xi32>
    %252 = arith.cmpi eq, %198, %251 : vector<8x128xi32>
    %cst_89 = arith.constant 0.000000e+00 : f32
    %253 = vector.broadcast %cst_89 : f32 to vector<8x128xf32>
    %254 = arith.select %252, %222, %253 : vector<8x128xi1>, vector<8x128xf32>
    %255 = tpu.concatenate %226, %230, %234, %238, %242, %246, %250, %254 in 1 : vector<8x128xf32>, vector<8x128xf32>, vector<8x128xf32>, vector<8x128xf32>, vector<8x128xf32>, vector<8x128xf32>, vector<8x128xf32>, vector<8x128xf32> -> vector<8x1024xf32>
    %256 = tpu.concatenate %155, %255 in 0 : vector<8x1024xf32>, vector<8x1024xf32> -> vector<16x1024xf32>
    %257 = arith.truncf %256 : vector<16x1024xf32> to vector<16x1024xbf16>
    %c0_90 = arith.constant 0 : index
    %c0_91 = arith.constant 0 : index
    %258 = vector.load %arg2[%c0_90, %c0_91] : memref<1024x32xbf16, #tpu.memory_space<vmem>>, vector<1024x32xbf16>
    %cst_92 = arith.constant dense<0.000000e+00> : vector<16x32xf32>
    %259 = tpu.matmul %257, %258, %cst_92 {dimension_numbers = #tpu.dot_dimension_numbers<[1], [0], [0], [1], [0, 0, 1, 1], [], []>} : vector<16x1024xbf16>, vector<1024x32xbf16>, vector<16x32xf32> -> vector<16x32xf32>
    %260 = vector.extract_strided_slice %259 {offsets = [0, 0], sizes = [1, 32], strides = [1, 1]} : vector<16x32xf32> to vector<1x32xf32>
    %261 = vector.extract_strided_slice %259 {offsets = [1, 0], sizes = [1, 32], strides = [1, 1]} : vector<16x32xf32> to vector<1x32xf32>
    %262 = arith.addf %260, %261 : vector<1x32xf32>
    %263 = vector.extract_strided_slice %259 {offsets = [2, 0], sizes = [1, 32], strides = [1, 1]} : vector<16x32xf32> to vector<1x32xf32>
    %264 = arith.addf %262, %263 : vector<1x32xf32>
    %265 = vector.extract_strided_slice %259 {offsets = [3, 0], sizes = [1, 32], strides = [1, 1]} : vector<16x32xf32> to vector<1x32xf32>
    %266 = arith.addf %264, %265 : vector<1x32xf32>
    %267 = vector.extract_strided_slice %259 {offsets = [4, 0], sizes = [1, 32], strides = [1, 1]} : vector<16x32xf32> to vector<1x32xf32>
    %268 = vector.extract_strided_slice %259 {offsets = [5, 0], sizes = [1, 32], strides = [1, 1]} : vector<16x32xf32> to vector<1x32xf32>
    %269 = arith.addf %267, %268 : vector<1x32xf32>
    %270 = vector.extract_strided_slice %259 {offsets = [6, 0], sizes = [1, 32], strides = [1, 1]} : vector<16x32xf32> to vector<1x32xf32>
    %271 = arith.addf %269, %270 : vector<1x32xf32>
    %272 = vector.extract_strided_slice %259 {offsets = [7, 0], sizes = [1, 32], strides = [1, 1]} : vector<16x32xf32> to vector<1x32xf32>
    %273 = arith.addf %271, %272 : vector<1x32xf32>
    %274 = vector.extract_strided_slice %259 {offsets = [8, 0], sizes = [1, 32], strides = [1, 1]} : vector<16x32xf32> to vector<1x32xf32>
    %275 = vector.extract_strided_slice %259 {offsets = [9, 0], sizes = [1, 32], strides = [1, 1]} : vector<16x32xf32> to vector<1x32xf32>
    %276 = arith.addf %274, %275 : vector<1x32xf32>
    %277 = vector.extract_strided_slice %259 {offsets = [10, 0], sizes = [1, 32], strides = [1, 1]} : vector<16x32xf32> to vector<1x32xf32>
    %278 = arith.addf %276, %277 : vector<1x32xf32>
    %279 = vector.extract_strided_slice %259 {offsets = [11, 0], sizes = [1, 32], strides = [1, 1]} : vector<16x32xf32> to vector<1x32xf32>
    %280 = arith.addf %278, %279 : vector<1x32xf32>
    %281 = vector.extract_strided_slice %259 {offsets = [12, 0], sizes = [1, 32], strides = [1, 1]} : vector<16x32xf32> to vector<1x32xf32>
    %282 = vector.extract_strided_slice %259 {offsets = [13, 0], sizes = [1, 32], strides = [1, 1]} : vector<16x32xf32> to vector<1x32xf32>
    %283 = arith.addf %281, %282 : vector<1x32xf32>
    %284 = vector.extract_strided_slice %259 {offsets = [14, 0], sizes = [1, 32], strides = [1, 1]} : vector<16x32xf32> to vector<1x32xf32>
    %285 = arith.addf %283, %284 : vector<1x32xf32>
    %286 = vector.extract_strided_slice %259 {offsets = [15, 0], sizes = [1, 32], strides = [1, 1]} : vector<16x32xf32> to vector<1x32xf32>
    %287 = arith.addf %285, %286 : vector<1x32xf32>
    %288 = tpu.concatenate %266, %273, %280, %287 in 1 : vector<1x32xf32>, vector<1x32xf32>, vector<1x32xf32>, vector<1x32xf32> -> vector<1x128xf32>
    %c0_93 = arith.constant 0 : index
    %c0_94 = arith.constant 0 : index
    %c0_95 = arith.constant 0 : index
    %289 = vector.load %arg3[%c0_93, %c0_94, %c0_95] : memref<1x1x128xf32, #tpu.memory_space<vmem>>, vector<1x1x128xf32>
    %290 = vector.shape_cast %289 : vector<1x1x128xf32> to vector<1x128xf32>
    %291 = vector.shape_cast %288 : vector<1x128xf32> to vector<1x1x128xf32>
    tpu.vector_store %arg3[%c0_93, %c0_94, %c0_95], %291 {strides = array<i32>} : memref<1x1x128xf32, #tpu.memory_space<vmem>>, vector<1x1x128xf32>,
    return
  }
  func.func @transform_0(%arg0: i32) -> (i32, i32, i32, i32) {
    %c0_i32 = arith.constant 0 : i32
    %c0_i32_0 = arith.constant 0 : i32
    %c0_i32_1 = arith.constant 0 : i32
    %c0_i32_2 = arith.constant 0 : i32
    return %arg0, %c0_i32, %c0_i32_0, %c0_i32_1 : i32, i32, i32, i32
  }
  func.func @transform_1(%arg0: i32) -> (i32, i32) {
    %c0_i32 = arith.constant 0 : i32
    %c0_i32_0 = arith.constant 0 : i32
    %c0_i32_1 = arith.constant 0 : i32
    return %c0_i32, %c0_i32_0 : i32, i32
  }
  func.func @transform_2(%arg0: i32) -> (i32, i32, i32) {
    %c0_i32 = arith.constant 0 : i32
    %c0_i32_0 = arith.constant 0 : i32
    %c0_i32_1 = arith.constant 0 : i32
    return %arg0, %c0_i32, %c0_i32_0 : i32, i32, i32
  }
}

</mosaic_0001>

<llo_original>
// kernel: motion_extractor_forward.2
$region0: #{motion_extractor_forward.2}
  #allocation0 [shape = 'u32[]', space=smem, size = 0x4, offset = 0x4, fixed_abs, tag = 'smem constant byte address 0x4 - core index']
  #allocation1 [shape = 'u32[144,128]{1,0:T(1,128)}', space=vmem, size = 0x12000, scoped, tag = 'internal scratch']
  %s0 = inlined_call_operand.vmem [shape: bf16[16,768], index: 0, kind: input, shape index: {}]
  %s1 = inlined_call_operand.vmem [shape: bf16[32,16], index: 1, kind: input, shape index: {}]
  %s2 = inlined_call_operand.vmem [shape: bf16[128,256], index: 2, kind: input, shape index: {}]
  %s3 = inlined_call_operand.vmem [shape: f32[32,1536], index: 3, kind: output, shape index: {}]
  %s4 = sld [smem:[#allocation0]]
  $region105: #{motion_extractor_forward.2} parent=0
    _
  %s6 = ssub.s32 1, %s4
  %s7 = scalar_select 0, %s6, %s4
  $region1: #{motion_extractor_forward.2} parent=0
    #allocation2 [shape = 'u8[8192]{0}', space=vmem, size = 0x2000, scoped, tag = 'input window, operand 0']
    #allocation3 [shape = 'u8[65536]{0}', space=vmem, size = 0x10000, scoped, tag = 'output window, operand 0']
    loop: start=0, step=1, limit=8
    $region2: #{motion_extractor_forward.2} parent=1 // loop_pre_header
      _
    $region3: #{motion_extractor_forward.2} parent=1 // loop_header
      %s9 = sphi 0, %s13
      %p10 = scmp.ge.s32.totalorder %s9, 8
      %s19 = sphi 0, %s21
      %s22 = sphi 0, %s19
      %s23 = sphi 0, %s22
      %s39 = sphi 0, %s23
      %s43 = sphi 0, %s43
      %s45 = sphi 0, %s43
      %s46 = sphi 0, %s45
      %s60 = sphi 0, %s46
      %s64 = sphi 0, %s64
      %s66 = sphi 0, %s64
      %s67 = sphi 0, %s66
      %s81 = sphi 0, %s67
      %s87 = sphi 0, %s89
      %s90 = sphi 0, %s87
      %s91 = sphi 0, %s90
      %s107 = sphi 0, %s91
    $region4: #{motion_extractor_forward.2} parent=1 // loop_header_branch
      %12 = sbr.rel (%p10) target = $region8
    $region5: #{motion_extractor_forward.2} parent=1 // loop_body
      %s14 = ssub.s32 %s9, 1
      %s15 = ssub.s32 %s9, 2
      %s16 = sadd.s32 %s9, 1
      %s17 = ssub.s32 %s9, %s16
      %p18 = scmp.eq.s32.totalorder %s17, 0
      %s20 = sadd.s32 %s19, 1
      %s21 = scalar_select %p18, %s19, %s20
      %p24 = pneg %p18
      %p25 = scmp.eq.s32.totalorder %s9, 5
      %p26 = por %p24, %p25
      %p27 = scmp.ne.s32.totalorder %s19, %s22
      %p28 = scmp.eq.s32.totalorder %s9, 0
      %p29 = por %p27, %p28
      %p30 = scmp.ne.s32.totalorder %s19, %s22
      %p31 = scmp.eq.s32.totalorder %s14, 5
      %p32 = por %p30, %p31
      %p33 = scmp.ne.s32.totalorder %s22, %s23
      %p34 = scmp.eq.s32.totalorder %s14, 0
      %p35 = por %p33, %p34
      %p36 = scmp.ne.s32.totalorder %s22, %s23
      %p37 = scmp.eq.s32.totalorder %s15, 5
      %p38 = por %p36, %p37
      %p40 = scmp.ne.s32.totalorder %s23, %s39
      %p41 = scmp.eq.s32.totalorder %s15, 0
      %p42 = por %p40, %p41
      %s44 = sadd.s32 %s43, 1
      %p47 = scmp.eq.s32.totalorder %s9, 5
      %p48 = scmp.ne.s32.totalorder %s43, %s45
      %p49 = scmp.eq.s32.totalorder %s9, 0
      %p50 = por %p48, %p49
      %p51 = scmp.ne.s32.totalorder %s43, %s45
      %p52 = scmp.eq.s32.totalorder %s14, 5
      %p53 = por %p51, %p52
      %p54 = scmp.ne.s32.totalorder %s45, %s46
      %p55 = scmp.eq.s32.totalorder %s14, 0
      %p56 = por %p54, %p55
      %p57 = scmp.ne.s32.totalorder %s45, %s46
      %p58 = scmp.eq.s32.totalorder %s15, 5
      %p59 = por %p57, %p58
      %p61 = scmp.ne.s32.totalorder %s46, %s60
      %p62 = scmp.eq.s32.totalorder %s15, 0
      %p63 = por %p61, %p62
      %s65 = sadd.s32 %s64, 1
      %p68 = scmp.eq.s32.totalorder %s9, 5
      %p69 = scmp.ne.s32.totalorder %s64, %s66
      %p70 = scmp.eq.s32.totalorder %s9, 0
      %p71 = por %p69, %p70
      %p72 = scmp.ne.s32.totalorder %s64, %s66
      %p73 = scmp.eq.s32.totalorder %s14, 5
      %p74 = por %p72, %p73
      %p75 = scmp.ne.s32.totalorder %s66, %s67
      %p76 = scmp.eq.s32.totalorder %s14, 0
      %p77 = por %p75, %p76
      %p78 = scmp.ne.s32.totalorder %s66, %s67
      %p79 = scmp.eq.s32.totalorder %s15, 5
      %p80 = por %p78, %p79
      %p82 = scmp.ne.s32.totalorder %s67, %s81
      %p83 = scmp.eq.s32.totalorder %s15, 0
      %p84 = por %p82, %p83
      %s85 = ssub.s32 %s9, %s16
      %p86 = scmp.eq.s32.totalorder %s85, 0
      %s88 = sadd.s32 %s87, 1
      %s89 = scalar_select %p86, %s87, %s88
      %p92 = pneg %p86
      %p93 = scmp.eq.s32.totalorder %s9, 5
      %p94 = por %p92, %p93
      %p95 = scmp.ne.s32.totalorder %s87, %s90
      %p96 = scmp.eq.s32.totalorder %s9, 0
      %p97 = por %p95, %p96
      %p98 = scmp.ne.s32.totalorder %s87, %s90
      %p99 = scmp.eq.s32.totalorder %s14, 5
      %p100 = por %p98, %p99
      %p101 = scmp.ne.s32.totalorder %s90, %s91
      %p102 = scmp.eq.s32.totalorder %s14, 0
      %p103 = por %p101, %p102
      %p104 = scmp.ne.s32.totalorder %s90, %s91
      %p105 = scmp.eq.s32.totalorder %s15, 5
      %p106 = por %p104, %p105
      %p108 = scmp.ne.s32.totalorder %s91, %s107
      %p109 = scmp.eq.s32.totalorder %s15, 0
      %p110 = por %p108, %p109
      %p111 = scmp.le.s32.totalorder 1, %s9
      %p112 = scmp.lt.s32.totalorder %s9, 7
      %p113 = pnand %p111, %p112
      %p114 = pneg %p113
      // Predicated region
      $region9: #{motion_extractor_forward.2} parent=5 // pred_check
        _
      $region10: #{motion_extractor_forward.2} parent=5 // pred_check_branch
        %116 = sbr.rel (%p113) target = $region12
      $region11: #{motion_extractor_forward.2} parent=5 // pred_region
        %s117 = ssub.s32 %s9, 1
        // Predicated region
        $region13: #{motion_extractor_forward.2} parent=11 // pred_check
          %p118 = pneg %p56
        $region14: #{motion_extractor_forward.2} parent=11 // pred_check_branch
          %120 = sbr.rel (%p118) target = $region16
        $region15: #{motion_extractor_forward.2} parent=11 // pred_region
          _
        $region16: #{motion_extractor_forward.2} parent=11 // pred_fallthru
          _
        // Predicated region
        $region17: #{motion_extractor_forward.2} parent=11 // pred_check
          %p121 = pneg %p77
        $region18: #{motion_extractor_forward.2} parent=11 // pred_check_branch
          %123 = sbr.rel (%p121) target = $region20
        $region19: #{motion_extractor_forward.2} parent=11 // pred_region
          _
        $region20: #{motion_extractor_forward.2} parent=11 // pred_fallthru
          _
      $region12: #{motion_extractor_forward.2} parent=5 // pred_fallthru
        _
      %p124 = scmp.lt.s32.totalorder %s9, 6
      // Predicated region
      $region21: #{motion_extractor_forward.2} parent=5 // pred_check
        %p125 = pneg %p124
      $region22: #{motion_extractor_forward.2} parent=5 // pred_check_branch
        %127 = sbr.rel (%p125) target = $region24
      $region23: #{motion_extractor_forward.2} parent=5 // pred_region
        // Predicated region
        $region25: #{motion_extractor_forward.2} parent=23 // pred_check
          %p128 = pneg %p29
        $region26: #{motion_extractor_forward.2} parent=23 // pred_check_branch
          %130 = sbr.rel (%p128) target = $region28
        $region27: #{motion_extractor_forward.2} parent=23 // pred_region
          %s131 = sand.u32 %s19, 1
          %s132 = sand.u32 %s19, 1
          %s133 = smul.addr %s132, 8
          %s134 = scalar_lea.vmem [#allocation2], %s133
          %s135 = smul.addr %s9, 4
          %s136 = scalar_lea.vmem %s0, %s135
          // Predicated region
          $region29: #{motion_extractor_forward.2} parent=27 // pred_check
            _
          $region30: #{motion_extractor_forward.2} parent=27 // pred_check_branch
            %138 = sbr.rel (0) target = $region32
          $region31: #{motion_extractor_forward.2} parent=27 // pred_region
            // Predicated region
            $region33: #{motion_extractor_forward.2} parent=31 // pred_check
              _
            $region34: #{motion_extractor_forward.2} parent=31 // pred_check_branch
              %140 = sbr.rel target = $region36
            $region35: #{motion_extractor_forward.2} parent=31 // pred_region
              // Predicated region
              $region48: #{motion_extractor_forward.2} parent=35 // pred_check
                _
              $region49: #{motion_extractor_forward.2} parent=35 // pred_check_branch
                %158 = sbr.rel (0) target = $region51
              $region50: #{motion_extractor_forward.2} parent=35 // pred_region
                loop: start=0, step=1, limit=1
                $region52: #{motion_extractor_forward.2} parent=50 // loop_pre_header
                  _
                $region53: #{motion_extractor_forward.2} parent=50 // loop_header
                  %s160 = sphi 0, %s164
                  %p161 = scmp.ge.s32.totalorder %s160, 1
                  %s165 = sphi %s136, %s136
                  %s166 = sphi %s134, %s134
                $region54: #{motion_extractor_forward.2} parent=50 // loop_header_branch
                  %163 = sbr.rel (%p161) target = $region58
                $region55: #{motion_extractor_forward.2} parent=50 // loop_body
                  _
                $region56: #{motion_extractor_forward.2} parent=50 // loop_footer
                  %s164 = sadd.s32 1, %s160
                $region57: #{motion_extractor_forward.2} parent=50 // loop_footer_branch
                  %159 = sbr.rel target = $region53
                $region58: #{motion_extractor_forward.2} parent=50 // loop_exit
                  _
                %s168 = ssub.s32 16, 1
                loop: start=0, step=1, limit=1
                $region59: #{motion_extractor_forward.2} parent=50 // loop_pre_header
                  _
                $region60: #{motion_extractor_forward.2} parent=50 // loop_header
                  %s170 = sphi 0, %s174
                  %p171 = scmp.ge.s32.totalorder %s170, 1
                  %s175 = sphi %s136, %s136
                  %s176 = sphi %s134, %s134
                $region61: #{motion_extractor_forward.2} parent=50 // loop_header_branch
                  %173 = sbr.rel (%p171) target = $region65
                $region62: #{motion_extractor_forward.2} parent=50 // loop_body
                  %v177 = vld [vmem:[%s175] sm:%s168]
                  %178 = vst [vmem:[%s176] sm:%s168] %v177
                  %v179 = vld [vmem:[%s175 + $0x18] sm:%s168]
                  %180 = vst [vmem:[%s176 + $0x4] sm:%s168] %v179
                $region63: #{motion_extractor_forward.2} parent=50 // loop_footer
                  %s174 = sadd.s32 1, %s170
                $region64: #{motion_extractor_forward.2} parent=50 // loop_footer_branch
                  %169 = sbr.rel target = $region60
                $region65: #{motion_extractor_forward.2} parent=50 // loop_exit
                  _
              $region51: #{motion_extractor_forward.2} parent=35 // pred_fallthru
                _
            $region36: #{motion_extractor_forward.2} parent=31 // pred_fallthru
              _
            // Predicated region
            $region37: #{motion_extractor_forward.2} parent=31 // pred_check
              _
            $region38: #{motion_extractor_forward.2} parent=31 // pred_check_branch
              %142 = sbr.rel (0) target = $region40
            $region39: #{motion_extractor_forward.2} parent=31 // pred_region
              %s144 = ssub.s32 16, 1
              loop: start=0, step=1, limit=1
              $region41: #{motion_extractor_forward.2} parent=39 // loop_pre_header
                _
              $region42: #{motion_extractor_forward.2} parent=39 // loop_header
                %s146 = sphi 0, %s150
                %p147 = scmp.ge.s32.totalorder %s146, 1
                %s151 = sphi %s136, %s136
                %s152 = sphi %s134, %s134
              $region43: #{motion_extractor_forward.2} parent=39 // loop_header_branch
                %149 = sbr.rel (%p147) target = $region47
              $region44: #{motion_extractor_forward.2} parent=39 // loop_body
                %v153 = vld [vmem:[%s151] sm:%s144]
                %154 = vst [vmem:[%s152] sm:%s144] %v153
                %v155 = vld [vmem:[%s151 + $0x18] sm:%s144]
                %156 = vst [vmem:[%s152 + $0x4] sm:%s144] %v155
              $region45: #{motion_extractor_forward.2} parent=39 // loop_footer
                %s150 = sadd.s32 1, %s146
              $region46: #{motion_extractor_forward.2} parent=39 // loop_footer_branch
                %145 = sbr.rel target = $region42
              $region47: #{motion_extractor_forward.2} parent=39 // loop_exit
                _
            $region40: #{motion_extractor_forward.2} parent=31 // pred_fallthru
              _
          $region32: #{motion_extractor_forward.2} parent=27 // pred_fallthru
            _
          %181 = vnop
        $region28: #{motion_extractor_forward.2} parent=23 // pred_fallthru
          _
      $region24: #{motion_extractor_forward.2} parent=5 // pred_fallthru
        _
      %p182 = scmp.le.s32.totalorder 1, %s9
      %p183 = scmp.lt.s32.totalorder %s9, 7
      %p184 = pnand %p182, %p183
      %p185 = pneg %p184
      // Predicated region
      $region66: #{motion_extractor_forward.2} parent=5 // pred_check
        _
      $region67: #{motion_extractor_forward.2} parent=5 // pred_check_branch
        %187 = sbr.rel (%p184) target = $region69
      $region68: #{motion_extractor_forward.2} parent=5 // pred_region
        %s188 = ssub.s32 %s9, 1
        %s189 = sand.u32 %s22, 1
        %s190 = sand.u32 %s22, 1
        %s191 = smul.addr %s190, 8
        %s192 = scalar_lea.vmem [#allocation2], %s191
        // Predicated region
        $region70: #{motion_extractor_forward.2} parent=68 // pred_check
          %p193 = pneg %p35
        $region71: #{motion_extractor_forward.2} parent=68 // pred_check_branch
          %195 = sbr.rel (%p193) target = $region73
        $region72: #{motion_extractor_forward.2} parent=68 // pred_region
          _
        $region73: #{motion_extractor_forward.2} parent=68 // pred_fallthru
          _
        %s196 = sand.u32 %s22, 1
        %s197 = sand.u32 %s22, 1
        %s198 = smul.addr %s197, 8
        %s199 = scalar_lea.vmem [#allocation2], %s198
        %p200 = pneg %p35
        %p201 = pneg %p32
        %p202 = pneg %p56
        %p203 = pneg %p53
        %p204 = pneg %p77
        %p205 = pneg %p74
        %p206 = pneg %p103
        %p207 = pneg %p100
        %s208 = sand.u32 %s90, 1
        %s209 = sand.u32 %s90, 1
        %s210 = smul.addr %s209, 64
        %s211 = scalar_lea.vmem [#allocation3], %s210
        %s212 = smul.u32 2, %s14
        %v214 = vld [vmem:[%s1] sm:$0xf]
        %v215 = vld [vmem:[%s1 + $0x4] sm:$0xf]
        %v216 = vld [vmem:[%s1 + $0x8] sm:$0xf]
        %v217 = vld [vmem:[%s1 + $0xc] sm:$0xf]
        %v218 = vld [vmem:[%s192] sm:$0xf]
        %v219 = vld [vmem:[%s192 + $0x4] sm:$0xf]
        %v224 = vunpack.c.l.b16 %v214
        %v225 = vunpack.c.l.b16 %v215
        %v226 = vunpack.c.l.b16 %v216
        %v227 = vunpack.c.l.b16 %v217
        %v228 = vpack.c.b16 %v225, %v224
        %v229 = vpack.c.b16 %v227, %v226
        %v232 = vunpack.c.l.b16 %v218
        %v233 = vunpack.c.l.b16 %v219
        %v234 = vpack.c.b16 %v233, %v232
        %vm236 = vcmask 130048
        %v238 = vsel %vm236, %v228, 0
        %v241 = vsel %vm236, %v229, 0
        %243 = vmatprep.subr.bf16.mxu0 0
        %244 = vmatpush1.bf16.msra.mxu0 0
        %245 = vmatprep.subr.bf16.mxu0 0
        %246 = vmatpush1.bf16.msra.mxu0 0
        %247 = vmatprep.subr.bf16.mxu0 0
        %248 = vmatpush1.bf16.msra.mxu0 0
        %249 = vmatprep.subr.bf16.mxu0 0
        %250 = vmatpush1.bf16.msra.mxu0 0
        %251 = vmatprep.subr.bf16.mxu0 0
        %252 = vmatpush1.bf16.msra.mxu0 0
        %253 = vmatprep.subr.bf16.mxu0 0
        %254 = vmatpush1.bf16.msra.mxu0 0
        %255 = vmatprep.subr.bf16.mxu0 0
        %256 = vmatpush1.bf16.msra.mxu0 0
        %257 = vmatprep.subr.bf16.mxu0 0
        %258 = vmatpush1.bf16.msra.mxu0 %v234
        %259 = vmatprep.subr.bf16.mxu0 0
        %260 = vmatpush2.bf16.msra.mxu0 0
        %261 = vmatprep.subr.bf16.mxu0 0
        %262 = vmatpush2.bf16.msra.mxu0 0
        %263 = vmatprep.subr.bf16.mxu0 0
        %264 = vmatpush2.bf16.msra.mxu0 0
        %265 = vmatprep.subr.bf16.mxu0 0
        %266 = vmatpush2.bf16.msra.mxu0 0
        %267 = vmatprep.subr.bf16.mxu0 0
        %268 = vmatpush2.bf16.msra.mxu0 0
        %269 = vmatprep.subr.bf16.mxu0 0
        %270 = vmatpush2.bf16.msra.mxu0 0
        %271 = vmatprep.subr.bf16.mxu0 0
        %272 = vmatpush2.bf16.msra.mxu0 0
        %273 = vmatprep.subr.bf16.mxu0 0
        %274 = vmatpush2.bf16.msra.mxu0 0
        %275 = vmatprep.mubr.bf16.mxu0 0
        %276 = vmatmul.mubr.bf16.gmra.mxu0 %v238
        %v277 = vpop.f32.mrf.mxu0
        %v278 = vadd.f32 0.0, %v277
        %v279 = vpop.f32.mrf.mxu0
        %v280 = vpop.f32.mrf.mxu0
        %v281 = vadd.f32 0.0, %v280
        %v282 = vpop.f32.mrf.mxu0
        %283 = vmatprep.mubr.bf16.mxu0 0
        %284 = vmatmul.mubr.bf16.gmra.mxu0 %v241
        %v285 = vpop.f32.mrf.mxu0
        %v286 = vadd.f32 0.0, %v285
        %v287 = vpop.f32.mrf.mxu0
        %v288 = vpop.f32.mrf.mxu0
        %v289 = vadd.f32 0.0, %v288
        %v290 = vpop.f32.mrf.mxu0
        %291 = vdwg.mxu0
        %v292 = vpack.c.bf16 %v281, %v278
        %v293 = vpack.c.bf16 %v289, %v286
        %v294 = vld [vmem:[%s2] sm:$0xff]
        %v295 = vld [vmem:[%s2 + $0x8] sm:$0xff]
        %v296 = vld [vmem:[%s2 + $0x10] sm:$0xff]
        %v297 = vld [vmem:[%s2 + $0x18] sm:$0xff]
        %v298 = vld [vmem:[%s2 + $0x20] sm:$0xff]
        %v299 = vld [vmem:[%s2 + $0x28] sm:$0xff]
        %v300 = vld [vmem:[%s2 + $0x30] sm:$0xff]
        %v301 = vld [vmem:[%s2 + $0x38] sm:$0xff]
        %v302 = vld [vmem:[%s2 + $0x40] sm:$0xff]
        %v303 = vld [vmem:[%s2 + $0x48] sm:$0xff]
        %v304 = vld [vmem:[%s2 + $0x50] sm:$0xff]
        %v305 = vld [vmem:[%s2 + $0x58] sm:$0xff]
        %v306 = vld [vmem:[%s2 + $0x60] sm:$0xff]
        %v307 = vld [vmem:[%s2 + $0x68] sm:$0xff]
        %v308 = vld [vmem:[%s2 + $0x70] sm:$0xff]
        %v309 = vld [vmem:[%s2 + $0x78] sm:$0xff]
        %v326 = vunpack.c.l.b16 %v294
        %v327 = vunpack.c.h.b16 %v294
        %v328 = vunpack.c.l.b16 %v295
        %v329 = vunpack.c.h.b16 %v295
        %v330 = vunpack.c.l.b16 %v296
        %v331 = vunpack.c.h.b16 %v296
        %v332 = vunpack.c.l.b16 %v297
        %v333 = vunpack.c.h.b16 %v297
        %v334 = vunpack.c.l.b16 %v298
        %v335 = vunpack.c.h.b16 %v298
        %v336 = vunpack.c.l.b16 %v299
        %v337 = vunpack.c.h.b16 %v299
        %v338 = vunpack.c.l.b16 %v300
        %v339 = vunpack.c.h.b16 %v300
        %v340 = vunpack.c.l.b16 %v301
        %v341 = vunpack.c.h.b16 %v301
        %v342 = vunpack.c.l.b16 %v302
        %v343 = vunpack.c.h.b16 %v302
        %v344 = vunpack.c.l.b16 %v303
        %v345 = vunpack.c.h.b16 %v303
        %v346 = vunpack.c.l.b16 %v304
        %v347 = vunpack.c.h.b16 %v304
        %v348 = vunpack.c.l.b16 %v305
        %v349 = vunpack.c.h.b16 %v305
        %v350 = vunpack.c.l.b16 %v306
        %v351 = vunpack.c.h.b16 %v306
        %v352 = vunpack.c.l.b16 %v307
        %v353 = vunpack.c.h.b16 %v307
        %v354 = vunpack.c.l.b16 %v308
        %v355 = vunpack.c.h.b16 %v308
        %v356 = vunpack.c.l.b16 %v309
        %v357 = vunpack.c.h.b16 %v309
        %v358 = vpack.c.b16 %v328, %v326
        %v359 = vpack.c.b16 %v329, %v327
        %v360 = vpack.c.b16 %v332, %v330
        %v361 = vpack.c.b16 %v333, %v331
        %v362 = vpack.c.b16 %v336, %v334
        %v363 = vpack.c.b16 %v337, %v335
        %v364 = vpack.c.b16 %v340, %v338
        %v365 = vpack.c.b16 %v341, %v339
        %v366 = vpack.c.b16 %v344, %v342
        %v367 = vpack.c.b16 %v345, %v343
        %v368 = vpack.c.b16 %v348, %v346
        %v369 = vpack.c.b16 %v349, %v347
        %v370 = vpack.c.b16 %v352, %v350
        %v371 = vpack.c.b16 %v353, %v351
        %v372 = vpack.c.b16 %v356, %v354
        %v373 = vpack.c.b16 %v357, %v355
        %390 = vmatprep.subr.bf16.mxu0 %v373
        %391 = vmatpush1.bf16.msra.mxu0 %v372
        %392 = vmatprep.subr.bf16.mxu0 %v371
        %393 = vmatpush1.bf16.msra.mxu0 %v370
        %394 = vmatprep.subr.bf16.mxu0 %v369
        %395 = vmatpush1.bf16.msra.mxu0 %v368
        %396 = vmatprep.subr.bf16.mxu0 %v367
        %397 = vmatpush1.bf16.msra.mxu0 %v366
        %398 = vmatprep.subr.bf16.mxu0 %v365
        %399 = vmatpush1.bf16.msra.mxu0 %v364
        %400 = vmatprep.subr.bf16.mxu0 %v363
        %401 = vmatpush1.bf16.msra.mxu0 %v362
        %402 = vmatprep.subr.bf16.mxu0 %v361
        %403 = vmatpush1.bf16.msra.mxu0 %v360
        %404 = vmatprep.subr.bf16.mxu0 %v359
        %405 = vmatpush1.bf16.msra.mxu0 %v358
        %406 = vmatprep.subr.bf16.mxu0 0
        %407 = vmatpush2.bf16.msra.mxu0 0
        %408 = vmatprep.subr.bf16.mxu0 0
        %409 = vmatpush2.bf16.msra.mxu0 0
        %410 = vmatprep.subr.bf16.mxu0 0
        %411 = vmatpush2.bf16.msra.mxu0 0
        %412 = vmatprep.subr.bf16.mxu0 0
        %413 = vmatpush2.bf16.msra.mxu0 0
        %414 = vmatprep.subr.bf16.mxu0 0
        %415 = vmatpush2.bf16.msra.mxu0 0
        %416 = vmatprep.subr.bf16.mxu0 0
        %417 = vmatpush2.bf16.msra.mxu0 0
        %418 = vmatprep.subr.bf16.mxu0 0
        %419 = vmatpush2.bf16.msra.mxu0 0
        %420 = vmatprep.subr.bf16.mxu0 0
        %421 = vmatpush2.bf16.msra.mxu0 0
        %422 = vmatprep.mubr.bf16.mxu0 0
        %423 = vmatmul.mubr.bf16.gmra.mxu0 %v292
        %v424 = vpop.f32.mrf.mxu0
        %v425 = vadd.f32 0.0, %v424
        %v426 = vpop.f32.mrf.mxu0
        %v427 = vadd.f32 0.0, %v426
        %v428 = vpop.f32.mrf.mxu0
        %v429 = vadd.f32 0.0, %v428
        %v430 = vpop.f32.mrf.mxu0
        %v431 = vadd.f32 0.0, %v430
        %432 = vmatprep.mubr.bf16.mxu0 0
        %433 = vmatmul.mubr.bf16.gmra.mxu0 %v293
        %v434 = vpop.f32.mrf.mxu0
        %v435 = vadd.f32 0.0, %v434
        %v436 = vpop.f32.mrf.mxu0
        %v437 = vadd.f32 0.0, %v436
        %v438 = vpop.f32.mrf.mxu0
        %v439 = vadd.f32 0.0, %v438
        %v440 = vpop.f32.mrf.mxu0
        %v441 = vadd.f32 0.0, %v440
        %442 = vdwg.mxu0
        %443 = vst [vmem:[%s211] sm:$0xff] %v425
        %444 = vst [vmem:[%s211 + $0x8] sm:$0xff] %v427
        %445 = vst [vmem:[%s211 + $0x10] sm:$0xff] %v429
        %446 = vst [vmem:[%s211 + $0x18] sm:$0xff] %v431
        %447 = vst [vmem:[%s211 + $0x20] sm:$0xff] %v435
        %448 = vst [vmem:[%s211 + $0x28] sm:$0xff] %v437
        %449 = vst [vmem:[%s211 + $0x30] sm:$0xff] %v439
        %450 = vst [vmem:[%s211 + $0x38] sm:$0xff] %v441
        %s451 = sand.u32 %s90, 1
        %s452 = sand.u32 %s90, 1
        %s453 = smul.addr %s452, 64
        %s454 = scalar_lea.vmem [#allocation3], %s453
        // Predicated region
        $region74: #{motion_extractor_forward.2} parent=68 // pred_check
          %p455 = pneg %p100
        $region75: #{motion_extractor_forward.2} parent=68 // pred_check_branch
          %457 = sbr.rel (%p455) target = $region77
        $region76: #{motion_extractor_forward.2} parent=68 // pred_region
          %s458 = smul.u32 2, %s14
          %s459 = smul.addr %s458, 8
          %s460 = scalar_lea.vmem %s3, %s459
          // Predicated region
          $region78: #{motion_extractor_forward.2} parent=76 // pred_check
            _
          $region79: #{motion_extractor_forward.2} parent=76 // pred_check_branch
            %462 = sbr.rel (0) target = $region81
          $region80: #{motion_extractor_forward.2} parent=76 // pred_region
            // Predicated region
            $region82: #{motion_extractor_forward.2} parent=80 // pred_check
              _
            $region83: #{motion_extractor_forward.2} parent=80 // pred_check_branch
              %464 = sbr.rel (0) target = $region85
            $region84: #{motion_extractor_forward.2} parent=80 // pred_region
              loop: start=0, step=1, limit=1
              $region86: #{motion_extractor_forward.2} parent=84 // loop_pre_header
                _
              $region87: #{motion_extractor_forward.2} parent=84 // loop_header
                %s466 = sphi 0, %s470
                %p467 = scmp.ge.s32.totalorder %s466, 1
                %s471 = sphi %s454, %s454
                %s472 = sphi %s460, %s460
              $region88: #{motion_extractor_forward.2} parent=84 // loop_header_branch
                %469 = sbr.rel (%p467) target = $region92
              $region89: #{motion_extractor_forward.2} parent=84 // loop_body
                %v473 = vld [vmem:[%s471] sm:$0xff]
                %474 = vst [vmem:[%s472] sm:$0xff] %v473
                %v475 = vld [vmem:[%s471 + $0x8] sm:$0xff]
                %476 = vst [vmem:[%s472 + $0x8] sm:$0xff] %v475
                %v477 = vld [vmem:[%s471 + $0x10] sm:$0xff]
                %478 = vst [vmem:[%s472 + $0x60] sm:$0xff] %v477
                %v479 = vld [vmem:[%s471 + $0x18] sm:$0xff]
                %480 = vst [vmem:[%s472 + $0x68] sm:$0xff] %v479
                %v481 = vld [vmem:[%s471 + $0x20] sm:$0xff]
                %482 = vst [vmem:[%s472 + $0xc0] sm:$0xff] %v481
                %v483 = vld [vmem:[%s471 + $0x28] sm:$0xff]
                %484 = vst [vmem:[%s472 + $0xc8] sm:$0xff] %v483
                %v485 = vld [vmem:[%s471 + $0x30] sm:$0xff]
                %486 = vst [vmem:[%s472 + $0x120] sm:$0xff] %v485
                %v487 = vld [vmem:[%s471 + $0x38] sm:$0xff]
                %488 = vst [vmem:[%s472 + $0x128] sm:$0xff] %v487
              $region90: #{motion_extractor_forward.2} parent=84 // loop_footer
                %s470 = sadd.s32 1, %s466
              $region91: #{motion_extractor_forward.2} parent=84 // loop_footer_branch
                %465 = sbr.rel target = $region87
              $region92: #{motion_extractor_forward.2} parent=84 // loop_exit
                _
            $region85: #{motion_extractor_forward.2} parent=80 // pred_fallthru
              _
            // Predicated region
            $region93: #{motion_extractor_forward.2} parent=80 // pred_check
              _
            $region94: #{motion_extractor_forward.2} parent=80 // pred_check_branch
              %490 = sbr.rel target = $region96
            $region95: #{motion_extractor_forward.2} parent=80 // pred_region
              _
            $region96: #{motion_extractor_forward.2} parent=80 // pred_fallthru
              _
          $region81: #{motion_extractor_forward.2} parent=76 // pred_fallthru
            _
          %491 = vnop
        $region77: #{motion_extractor_forward.2} parent=68 // pred_fallthru
          _
      $region69: #{motion_extractor_forward.2} parent=5 // pred_fallthru
        _
      %p492 = scmp.le.s32.totalorder 2, %s9
      // Predicated region
      $region97: #{motion_extractor_forward.2} parent=5 // pred_check
        %p493 = pneg %p492
      $region98: #{motion_extractor_forward.2} parent=5 // pred_check_branch
        %495 = sbr.rel (%p493) target = $region100
      $region99: #{motion_extractor_forward.2} parent=5 // pred_region
        %s496 = ssub.s32 %s9, 2
        // Predicated region
        $region101: #{motion_extractor_forward.2} parent=99 // pred_check
          %p497 = pneg %p106
        $region102: #{motion_extractor_forward.2} parent=99 // pred_check_branch
          %499 = sbr.rel (%p497) target = $region104
        $region103: #{motion_extractor_forward.2} parent=99 // pred_region
          %s500 = sand.u32 %s91, 1
          %s501 = sand.u32 %s91, 1
          %s502 = smul.addr %s501, 64
          %s503 = scalar_lea.vmem [#allocation3], %s502
        $region104: #{motion_extractor_forward.2} parent=99 // pred_fallthru
          _
      $region100: #{motion_extractor_forward.2} parent=5 // pred_fallthru
        _
    $region6: #{motion_extractor_forward.2} parent=1 // loop_footer
      %s13 = sadd.s32 1, %s9
    $region7: #{motion_extractor_forward.2} parent=1 // loop_footer_branch
      %8 = sbr.rel target = $region3
    $region8: #{motion_extractor_forward.2} parent=1 // loop_exit
      _

// kernel: motion_extractor_forward.3
$region0: #{motion_extractor_forward.3}
  #allocation0 [shape = 'u32[]', space=smem, size = 0x4, offset = 0x4, fixed_abs, tag = 'smem constant byte address 0x4 - core index']
  #allocation1 [shape = 'u32[144,128]{1,0:T(1,128)}', space=vmem, size = 0x12000, scoped, tag = 'internal scratch']
  %s0 = inlined_call_operand.vmem [shape: f32[2,2,8,128], index: 0, kind: input, shape index: {}]
  %s1 = inlined_call_operand.vmem [shape: bf16[1024,32], index: 1, kind: input, shape index: {}]
  %s2 = inlined_call_operand.hbm [shape: f32[2,1,128], index: 2, kind: output, shape index: {}]
  %s3 = sld [smem:[#allocation0]]
  $region41: #{motion_extractor_forward.3} parent=0
    _
  %s5 = ssub.s32 1, %s3
  %s6 = scalar_select 0, %s5, %s3
  $region1: #{motion_extractor_forward.3} parent=0
    #allocation2 [shape = 'u8[1024]{0}', space=vmem, size = 0x400, scoped, tag = 'output window, operand 0']
    #allocation3 [shape = 's32[2]{0}', space=sflag, size = 0x8, scoped, tag = 'scoped memory for motion_extractor_forward.3']
    %7 = vsyncpa [#allocation3], 0
    %s8 = scalar_lea.sflag [#allocation3], 1
    %9 = vsyncpa %s8, 0
    loop: start=0, step=1, limit=4
    $region2: #{motion_extractor_forward.3} parent=1 // loop_pre_header
      _
    $region3: #{motion_extractor_forward.3} parent=1 // loop_header
      %s11 = sphi 0, %s15
      %p12 = scmp.ge.s32.totalorder %s11, 4
      %s21 = sphi 0, %s23
      %s24 = sphi 0, %s21
      %s25 = sphi 0, %s24
      %s41 = sphi 0, %s25
      %s45 = sphi 0, %s45
      %s47 = sphi 0, %s45
      %s48 = sphi 0, %s47
      %s62 = sphi 0, %s48
      %s68 = sphi 0, %s70
      %s71 = sphi 0, %s68
      %s72 = sphi 0, %s71
      %s88 = sphi 0, %s72
    $region4: #{motion_extractor_forward.3} parent=1 // loop_header_branch
      %14 = sbr.rel (%p12) target = $region8
    $region5: #{motion_extractor_forward.3} parent=1 // loop_body
      %s16 = ssub.s32 %s11, 1
      %s17 = ssub.s32 %s11, 2
      %s18 = sadd.s32 %s11, 1
      %s19 = ssub.s32 %s11, %s18
      %p20 = scmp.eq.s32.totalorder %s19, 0
      %s22 = sadd.s32 %s21, 1
      %s23 = scalar_select %p20, %s21, %s22
      %p26 = pneg %p20
      %p27 = scmp.eq.s32.totalorder %s11, 1
      %p28 = por %p26, %p27
      %p29 = scmp.ne.s32.totalorder %s21, %s24
      %p30 = scmp.eq.s32.totalorder %s11, 0
      %p31 = por %p29, %p30
      %p32 = scmp.ne.s32.totalorder %s21, %s24
      %p33 = scmp.eq.s32.totalorder %s16, 1
      %p34 = por %p32, %p33
      %p35 = scmp.ne.s32.totalorder %s24, %s25
      %p36 = scmp.eq.s32.totalorder %s16, 0
      %p37 = por %p35, %p36
      %p38 = scmp.ne.s32.totalorder %s24, %s25
      %p39 = scmp.eq.s32.totalorder %s17, 1
      %p40 = por %p38, %p39
      %p42 = scmp.ne.s32.totalorder %s25, %s41
      %p43 = scmp.eq.s32.totalorder %s17, 0
      %p44 = por %p42, %p43
      %s46 = sadd.s32 %s45, 1
      %p49 = scmp.eq.s32.totalorder %s11, 1
      %p50 = scmp.ne.s32.totalorder %s45, %s47
      %p51 = scmp.eq.s32.totalorder %s11, 0
      %p52 = por %p50, %p51
      %p53 = scmp.ne.s32.totalorder %s45, %s47
      %p54 = scmp.eq.s32.totalorder %s16, 1
      %p55 = por %p53, %p54
      %p56 = scmp.ne.s32.totalorder %s47, %s48
      %p57 = scmp.eq.s32.totalorder %s16, 0
      %p58 = por %p56, %p57
      %p59 = scmp.ne.s32.totalorder %s47, %s48
      %p60 = scmp.eq.s32.totalorder %s17, 1
      %p61 = por %p59, %p60
      %p63 = scmp.ne.s32.totalorder %s48, %s62
      %p64 = scmp.eq.s32.totalorder %s17, 0
      %p65 = por %p63, %p64
      %s66 = ssub.s32 %s11, %s18
      %p67 = scmp.eq.s32.totalorder %s66, 0
      %s69 = sadd.s32 %s68, 1
      %s70 = scalar_select %p67, %s68, %s69
      %p73 = pneg %p67
      %p74 = scmp.eq.s32.totalorder %s11, 1
      %p75 = por %p73, %p74
      %p76 = scmp.ne.s32.totalorder %s68, %s71
      %p77 = scmp.eq.s32.totalorder %s11, 0
      %p78 = por %p76, %p77
      %p79 = scmp.ne.s32.totalorder %s68, %s71
      %p80 = scmp.eq.s32.totalorder %s16, 1
      %p81 = por %p79, %p80
      %p82 = scmp.ne.s32.totalorder %s71, %s72
      %p83 = scmp.eq.s32.totalorder %s16, 0
      %p84 = por %p82, %p83
      %p85 = scmp.ne.s32.totalorder %s71, %s72
      %p86 = scmp.eq.s32.totalorder %s17, 1
      %p87 = por %p85, %p86
      %p89 = scmp.ne.s32.totalorder %s72, %s88
      %p90 = scmp.eq.s32.totalorder %s17, 0
      %p91 = por %p89, %p90
      %p92 = scmp.le.s32.totalorder 1, %s11
      %p93 = scmp.lt.s32.totalorder %s11, 3
      %p94 = pnand %p92, %p93
      %p95 = pneg %p94
      // Predicated region
      $region9: #{motion_extractor_forward.3} parent=5 // pred_check
        _
      $region10: #{motion_extractor_forward.3} parent=5 // pred_check_branch
        %97 = sbr.rel (%p94) target = $region12
      $region11: #{motion_extractor_forward.3} parent=5 // pred_region
        %s98 = ssub.s32 %s11, 1
        // Predicated region
        $region13: #{motion_extractor_forward.3} parent=11 // pred_check
          %p99 = pneg %p58
        $region14: #{motion_extractor_forward.3} parent=11 // pred_check_branch
          %101 = sbr.rel (%p99) target = $region16
        $region15: #{motion_extractor_forward.3} parent=11 // pred_region
          _
        $region16: #{motion_extractor_forward.3} parent=11 // pred_fallthru
          _
      $region12: #{motion_extractor_forward.3} parent=5 // pred_fallthru
        _
      %p102 = scmp.lt.s32.totalorder %s11, 2
      // Predicated region
      $region17: #{motion_extractor_forward.3} parent=5 // pred_check
        %p103 = pneg %p102
      $region18: #{motion_extractor_forward.3} parent=5 // pred_check_branch
        %105 = sbr.rel (%p103) target = $region20
      $region19: #{motion_extractor_forward.3} parent=5 // pred_region
        // Predicated region
        $region21: #{motion_extractor_forward.3} parent=19 // pred_check
          %p106 = pneg %p31
        $region22: #{motion_extractor_forward.3} parent=19 // pred_check_branch
          %108 = sbr.rel (%p106) target = $region24
        $region23: #{motion_extractor_forward.3} parent=19 // pred_region
          %p109 = scmp.lt.s32.totalorder %s11, 1
          %s110 = scalar_select %p109, %s11, 1
          %s111 = smul.addr %s110, 2
          %s112 = smul.addr %s111, 8
          %s113 = scalar_lea.vmem %s0, %s112
        $region24: #{motion_extractor_forward.3} parent=19 // pred_fallthru
          _
      $region20: #{motion_extractor_forward.3} parent=5 // pred_fallthru
        _
      %p114 = scmp.le.s32.totalorder 1, %s11
      %p115 = scmp.lt.s32.totalorder %s11, 3
      %p116 = pnand %p114, %p115
      %p117 = pneg %p116
      // Predicated region
      $region25: #{motion_extractor_forward.3} parent=5 // pred_check
        _
      $region26: #{motion_extractor_forward.3} parent=5 // pred_check_branch
        %119 = sbr.rel (%p116) target = $region28
      $region27: #{motion_extractor_forward.3} parent=5 // pred_region
        %s120 = ssub.s32 %s11, 1
        %p121 = scmp.lt.s32.totalorder %s16, 1
        %s122 = scalar_select %p121, %s16, 1
        %s123 = smul.addr %s122, 2
        %s124 = smul.addr %s123, 8
        %s125 = scalar_lea.vmem %s0, %s124
        %p126 = pneg %p37
        %p127 = pneg %p34
        %p128 = pneg %p58
        %p129 = pneg %p55
        %p130 = pneg %p84
        %p131 = pneg %p81
        %s132 = sand.u32 %s71, 1
        %s133 = scalar_lea.sflag [#allocation3], %s132
        %s134 = sand.u32 %s71, 1
        %s135 = scalar_lea.vmem [#allocation2], %s134
        %p136 = scmp.lt.s32.totalorder %s16, 1
        %s137 = scalar_select %p136, %s16, 1
        %s138 = smul.addr %s137, 2
        %s139 = smul.addr %s138, 8
        %s140 = scalar_lea.vmem %s0, %s139
        %v142 = vld [vmem:[%s140] sm:$0xff]
        %v143 = vld [vmem:[%s140 + $0x8] sm:$0xff]
        %v144 = vlaneseq
        %v145 = vshrl.u32 %v144, 7
        %vm146 = vcmp.lt.s32.totalorder %v145, 0
        %v147 = vsub.s32 0, %v145
        %v148 = vsel %vm146, %v147, %v145
        %v149 = vshrl.u32 %v148, 3
        %v150 = vand.u32 %v148, 7
        %v151 = vsub.s32 0, %v150
        %v152 = vsel %vm146, %v151, %v150
        %vm153 = vcmp.ne.s32.totalorder %v152, 0
        %vm154 = vcmp.lt.s32.totalorder %v152, 0
        %vm155 = vmand %vm154, %vm153
        %v156 = vadd.s32 %v152, 8
        %v157 = vsel %vm155, %v156, %v152
        %vm158 = vcmp.ge.s32.totalorder %v157, 1
        %v160 = vrot.slane %v142, 7
        %vm162 = vcmask 1040384
        %v163 = vsel %vm162, %v142, %v160
        %v164 = vsub.f32 %v142, %v163
        %v165 = vsel %vm158, %v164, 0.0
        %v167 = vrot.slane %v143, 7
        %v169 = vsel %vm162, %v143, %v167
        %v170 = vsub.f32 %v143, %v169
        %v171 = vsel %vm158, %v170, 0.0
        %vm172 = vcmp.ge.s32.totalorder %v157, 2
        %v174 = vrot.slane %v165, 7
        %v176 = vsel %vm162, %v165, %v174
        %v177 = vsub.f32 %v165, %v176
        %v178 = vsel %vm172, %v177, 0.0
        %v180 = vrot.slane %v171, 7
        %v182 = vsel %vm162, %v171, %v180
        %v183 = vsub.f32 %v171, %v182
        %v184 = vsel %vm172, %v183, 0.0
        %v185 = vand.u32 2147483647, %v165
        %v186 = vand.u32 2147483647, %v171
        %vm187 = vcmp.gt.f32.partialorder %v171, 0.0
        %vm188 = vcmp.ge.f32.partialorder %v165, 0.0
        %vm189 = vcmp.lt.f32.partialorder %v165, %v171
        %v190 = vsel %vm189, 4, 5
        %vm191 = vcmp.gt.f32.partialorder %v185, %v186
        %v192 = vsel %vm191, 2, 3
        %v193 = vsel %vm188, %v190, %v192
        %vm194 = vcmp.lt.f32.partialorder %v171, 0.0
        %vm195 = vcmp.gt.f32.partialorder %v165, 0.0
        %v196 = vsel %vm191, 6, 7
        %vm197 = vcmp.lt.f32.partialorder %v165, 0.0
        %vm198 = vcmp.lt.f32.partialorder %v185, %v186
        %v199 = vsel %vm198, 0, 1
        %v200 = vsel %vm197, %v199, 7
        %v201 = vsel %vm195, %v196, %v200
        %v202 = vsel %vm197, 2, 4
        %v203 = vsel %vm195, 6, %v202
        %v204 = vsel %vm194, %v201, %v203
        %v205 = vsel %vm187, %v193, %v204
        %v206 = vmul.f32 %v165, %v165
        %v207 = vmul.f32 %v171, %v171
        %v208 = vadd.f32 %v206, %v207
        %v209 = vrsqrt.pop %v208
        %v210 = vmul.f32 %v208, %v209
        %vm211 = vcmp.eq.f32.partialorder %v208, inf
        %v212 = vsel %vm211, %v208, %v210
        %vm213 = vcmp.eq.f32.partialorder %v208, 0.0
        %v214 = vand.u32 %v208, 2147483648
        %v215 = vsel %vm213, %v214, %v212
        %v216 = vmax.f32 %v215, 0.0
        %v217 = vmin.f32 %v216, 255.0
        %v218 = vadd.f32 %v217, 1.0
        %v220 = vshra.s32 %v218, 23
        %v221 = vsub.s32 %v220, 127
        %v222 = vand.u32 %v218, 8388607
        %vm223 = vcmp.ne.s32.totalorder %v222, 0
        %v224 = vsel %vm223, 1, 0
        %v225 = vadd.s32 %v221, %v224
        %v226 = vcvt.s32.f32 %v225
        %v227 = vmul.f32 %v226, 0.125
        %vm228 = vcmp.eq.s32.totalorder %v205, 0
        %v229 = vsel %vm228, %v227, 0.0
        %vm230 = vcmp.eq.s32.totalorder %v205, 1
        %v231 = vsel %vm230, %v227, 0.0
        %vm232 = vcmp.eq.s32.totalorder %v205, 2
        %v233 = vsel %vm232, %v227, 0.0
        %vm234 = vcmp.eq.s32.totalorder %v205, 3
        %v235 = vsel %vm234, %v227, 0.0
        %vm236 = vcmp.eq.s32.totalorder %v205, 4
        %v237 = vsel %vm236, %v227, 0.0
        %vm238 = vcmp.eq.s32.totalorder %v205, 5
        %v239 = vsel %vm238, %v227, 0.0
        %vm240 = vcmp.eq.s32.totalorder %v205, 6
        %v241 = vsel %vm240, %v227, 0.0
        %vm242 = vcmp.eq.s32.totalorder %v205, 7
        %v243 = vsel %vm242, %v227, 0.0
        %v244 = vand.u32 2147483647, %v178
        %v245 = vand.u32 2147483647, %v184
        %vm246 = vcmp.gt.f32.partialorder %v184, 0.0
        %vm247 = vcmp.ge.f32.partialorder %v178, 0.0
        %vm248 = vcmp.lt.f32.partialorder %v178, %v184
        %v249 = vsel %vm248, 4, 5
        %vm250 = vcmp.gt.f32.partialorder %v244, %v245
        %v251 = vsel %vm250, 2, 3
        %v252 = vsel %vm247, %v249, %v251
        %vm253 = vcmp.lt.f32.partialorder %v184, 0.0
        %vm254 = vcmp.gt.f32.partialorder %v178, 0.0
        %v255 = vsel %vm250, 6, 7
        %vm256 = vcmp.lt.f32.partialorder %v178, 0.0
        %vm257 = vcmp.lt.f32.partialorder %v244, %v245
        %v258 = vsel %vm257, 0, 1
        %v259 = vsel %vm256, %v258, 7
        %v260 = vsel %vm254, %v255, %v259
        %v261 = vsel %vm256, 2, 4
        %v262 = vsel %vm254, 6, %v261
        %v263 = vsel %vm253, %v260, %v262
        %v264 = vsel %vm246, %v252, %v263
        %v265 = vmul.f32 %v178, %v178
        %v266 = vmul.f32 %v184, %v184
        %v267 = vadd.f32 %v265, %v266
        %v268 = vrsqrt.pop %v267
        %v269 = vmul.f32 %v267, %v268
        %vm270 = vcmp.eq.f32.partialorder %v267, inf
        %v271 = vsel %vm270, %v267, %v269
        %vm272 = vcmp.eq.f32.partialorder %v267, 0.0
        %v273 = vand.u32 %v267, 2147483648
        %v274 = vsel %vm272, %v273, %v271
        %v275 = vmax.f32 %v274, 0.0
        %v276 = vmin.f32 %v275, 255.0
        %v277 = vadd.f32 %v276, 1.0
        %v279 = vshra.s32 %v277, 23
        %v280 = vsub.s32 %v279, 127
        %v281 = vand.u32 %v277, 8388607
        %vm282 = vcmp.ne.s32.totalorder %v281, 0
        %v283 = vsel %vm282, 1, 0
        %v284 = vadd.s32 %v280, %v283
        %v285 = vcvt.s32.f32 %v284
        %v286 = vmul.f32 %v285, 0.125
        %vm287 = vcmp.eq.s32.totalorder %v264, 0
        %v288 = vsel %vm287, %v286, 0.0
        %vm289 = vcmp.eq.s32.totalorder %v264, 1
        %v290 = vsel %vm289, %v286, 0.0
        %vm291 = vcmp.eq.s32.totalorder %v264, 2
        %v292 = vsel %vm291, %v286, 0.0
        %vm293 = vcmp.eq.s32.totalorder %v264, 3
        %v294 = vsel %vm293, %v286, 0.0
        %vm295 = vcmp.eq.s32.totalorder %v264, 4
        %v296 = vsel %vm295, %v286, 0.0
        %vm297 = vcmp.eq.s32.totalorder %v264, 5
        %v298 = vsel %vm297, %v286, 0.0
        %vm299 = vcmp.eq.s32.totalorder %v264, 6
        %v300 = vsel %vm299, %v286, 0.0
        %vm301 = vcmp.eq.s32.totalorder %v264, 7
        %v302 = vsel %vm301, %v286, 0.0
        %v303 = vpack.c.bf16 %v288, %v229
        %v304 = vpack.c.bf16 %v290, %v231
        %v305 = vpack.c.bf16 %v292, %v233
        %v306 = vpack.c.bf16 %v294, %v235
        %v307 = vpack.c.bf16 %v296, %v237
        %v308 = vpack.c.bf16 %v298, %v239
        %v309 = vpack.c.bf16 %v300, %v241
        %v310 = vpack.c.bf16 %v302, %v243
        %v311 = vld [vmem:[%s1] sm:$0xf]
        %v312 = vld [vmem:[%s1 + $0x4] sm:$0xf]
        %v313 = vld [vmem:[%s1 + $0x8] sm:$0xf]
        %v314 = vld [vmem:[%s1 + $0xc] sm:$0xf]
        %v315 = vld [vmem:[%s1 + $0x10] sm:$0xf]
        %v316 = vld [vmem:[%s1 + $0x14] sm:$0xf]
        %v317 = vld [vmem:[%s1 + $0x18] sm:$0xf]
        %v318 = vld [vmem:[%s1 + $0x1c] sm:$0xf]
        %v319 = vld [vmem:[%s1 + $0x20] sm:$0xf]
        %v320 = vld [vmem:[%s1 + $0x24] sm:$0xf]
        %v321 = vld [vmem:[%s1 + $0x28] sm:$0xf]
        %v322 = vld [vmem:[%s1 + $0x2c] sm:$0xf]
        %v323 = vld [vmem:[%s1 + $0x30] sm:$0xf]
        %v324 = vld [vmem:[%s1 + $0x34] sm:$0xf]
        %v325 = vld [vmem:[%s1 + $0x38] sm:$0xf]
        %v326 = vld [vmem:[%s1 + $0x3c] sm:$0xf]
        %v327 = vld [vmem:[%s1 + $0x40] sm:$0xf]
        %v328 = vld [vmem:[%s1 + $0x44] sm:$0xf]
        %v329 = vld [vmem:[%s1 + $0x48] sm:$0xf]
        %v330 = vld [vmem:[%s1 + $0x4c] sm:$0xf]
        %v331 = vld [vmem:[%s1 + $0x50] sm:$0xf]
        %v332 = vld [vmem:[%s1 + $0x54] sm:$0xf]
        %v333 = vld [vmem:[%s1 + $0x58] sm:$0xf]
        %v334 = vld [vmem:[%s1 + $0x5c] sm:$0xf]
        %v335 = vld [vmem:[%s1 + $0x60] sm:$0xf]
        %v336 = vld [vmem:[%s1 + $0x64] sm:$0xf]
        %v337 = vld [vmem:[%s1 + $0x68] sm:$0xf]
        %v338 = vld [vmem:[%s1 + $0x6c] sm:$0xf]
        %v339 = vld [vmem:[%s1 + $0x70] sm:$0xf]
        %v340 = vld [vmem:[%s1 + $0x74] sm:$0xf]
        %v341 = vld [vmem:[%s1 + $0x78] sm:$0xf]
        %v342 = vld [vmem:[%s1 + $0x7c] sm:$0xf]
        %v343 = vld [vmem:[%s1 + $0x80] sm:$0xf]
        %v344 = vld [vmem:[%s1 + $0x84] sm:$0xf]
        %v345 = vld [vmem:[%s1 + $0x88] sm:$0xf]
        %v346 = vld [vmem:[%s1 + $0x8c] sm:$0xf]
        %v347 = vld [vmem:[%s1 + $0x90] sm:$0xf]
        %v348 = vld [vmem:[%s1 + $0x94] sm:$0xf]
        %v349 = vld [vmem:[%s1 + $0x98] sm:$0xf]
        %v350 = vld [vmem:[%s1 + $0x9c] sm:$0xf]
        %v351 = vld [vmem:[%s1 + $0xa0] sm:$0xf]
        %v352 = vld [vmem:[%s1 + $0xa4] sm:$0xf]
        %v353 = vld [vmem:[%s1 + $0xa8] sm:$0xf]
        %v354 = vld [vmem:[%s1 + $0xac] sm:$0xf]
        %v355 = vld [vmem:[%s1 + $0xb0] sm:$0xf]
        %v356 = vld [vmem:[%s1 + $0xb4] sm:$0xf]
        %v357 = vld [vmem:[%s1 + $0xb8] sm:$0xf]
        %v358 = vld [vmem:[%s1 + $0xbc] sm:$0xf]
        %v359 = vld [vmem:[%s1 + $0xc0] sm:$0xf]
        %v360 = vld [vmem:[%s1 + $0xc4] sm:$0xf]
        %v361 = vld [vmem:[%s1 + $0xc8] sm:$0xf]
        %v362 = vld [vmem:[%s1 + $0xcc] sm:$0xf]
        %v363 = vld [vmem:[%s1 + $0xd0] sm:$0xf]
        %v364 = vld [vmem:[%s1 + $0xd4] sm:$0xf]
        %v365 = vld [vmem:[%s1 + $0xd8] sm:$0xf]
        %v366 = vld [vmem:[%s1 + $0xdc] sm:$0xf]
        %v367 = vld [vmem:[%s1 + $0xe0] sm:$0xf]
        %v368 = vld [vmem:[%s1 + $0xe4] sm:$0xf]
        %v369 = vld [vmem:[%s1 + $0xe8] sm:$0xf]
        %v370 = vld [vmem:[%s1 + $0xec] sm:$0xf]
        %v371 = vld [vmem:[%s1 + $0xf0] sm:$0xf]
        %v372 = vld [vmem:[%s1 + $0xf4] sm:$0xf]
        %v373 = vld [vmem:[%s1 + $0xf8] sm:$0xf]
        %v374 = vld [vmem:[%s1 + $0xfc] sm:$0xf]
        %v375 = vld [vmem:[%s1 + $0x100] sm:$0xf]
        %v376 = vld [vmem:[%s1 + $0x104] sm:$0xf]
        %v377 = vld [vmem:[%s1 + $0x108] sm:$0xf]
        %v378 = vld [vmem:[%s1 + $0x10c] sm:$0xf]
        %v379 = vld [vmem:[%s1 + $0x110] sm:$0xf]
        %v380 = vld [vmem:[%s1 + $0x114] sm:$0xf]
        %v381 = vld [vmem:[%s1 + $0x118] sm:$0xf]
        %v382 = vld [vmem:[%s1 + $0x11c] sm:$0xf]
        %v383 = vld [vmem:[%s1 + $0x120] sm:$0xf]
        %v384 = vld [vmem:[%s1 + $0x124] sm:$0xf]
        %v385 = vld [vmem:[%s1 + $0x128] sm:$0xf]
        %v386 = vld [vmem:[%s1 + $0x12c] sm:$0xf]
        %v387 = vld [vmem:[%s1 + $0x130] sm:$0xf]
        %v388 = vld [vmem:[%s1 + $0x134] sm:$0xf]
        %v389 = vld [vmem:[%s1 + $0x138] sm:$0xf]
        %v390 = vld [vmem:[%s1 + $0x13c] sm:$0xf]
        %v391 = vld [vmem:[%s1 + $0x140] sm:$0xf]
        %v392 = vld [vmem:[%s1 + $0x144] sm:$0xf]
        %v393 = vld [vmem:[%s1 + $0x148] sm:$0xf]
        %v394 = vld [vmem:[%s1 + $0x14c] sm:$0xf]
        %v395 = vld [vmem:[%s1 + $0x150] sm:$0xf]
        %v396 = vld [vmem:[%s1 + $0x154] sm:$0xf]
        %v397 = vld [vmem:[%s1 + $0x158] sm:$0xf]
        %v398 = vld [vmem:[%s1 + $0x15c] sm:$0xf]
        %v399 = vld [vmem:[%s1 + $0x160] sm:$0xf]
        %v400 = vld [vmem:[%s1 + $0x164] sm:$0xf]
        %v401 = vld [vmem:[%s1 + $0x168] sm:$0xf]
        %v402 = vld [vmem:[%s1 + $0x16c] sm:$0xf]
        %v403 = vld [vmem:[%s1 + $0x170] sm:$0xf]
        %v404 = vld [vmem:[%s1 + $0x174] sm:$0xf]
        %v405 = vld [vmem:[%s1 + $0x178] sm:$0xf]
        %v406 = vld [vmem:[%s1 + $0x17c] sm:$0xf]
        %v407 = vld [vmem:[%s1 + $0x180] sm:$0xf]
        %v408 = vld [vmem:[%s1 + $0x184] sm:$0xf]
        %v409 = vld [vmem:[%s1 + $0x188] sm:$0xf]
        %v410 = vld [vmem:[%s1 + $0x18c] sm:$0xf]
        %v411 = vld [vmem:[%s1 + $0x190] sm:$0xf]
        %v412 = vld [vmem:[%s1 + $0x194] sm:$0xf]
        %v413 = vld [vmem:[%s1 + $0x198] sm:$0xf]
        %v414 = vld [vmem:[%s1 + $0x19c] sm:$0xf]
        %v415 = vld [vmem:[%s1 + $0x1a0] sm:$0xf]
        %v416 = vld [vmem:[%s1 + $0x1a4] sm:$0xf]
        %v417 = vld [vmem:[%s1 + $0x1a8] sm:$0xf]
        %v418 = vld [vmem:[%s1 + $0x1ac] sm:$0xf]
        %v419 = vld [vmem:[%s1 + $0x1b0] sm:$0xf]
        %v420 = vld [vmem:[%s1 + $0x1b4] sm:$0xf]
        %v421 = vld [vmem:[%s1 + $0x1b8] sm:$0xf]
        %v422 = vld [vmem:[%s1 + $0x1bc] sm:$0xf]
        %v423 = vld [vmem:[%s1 + $0x1c0] sm:$0xf]
        %v424 = vld [vmem:[%s1 + $0x1c4] sm:$0xf]
        %v425 = vld [vmem:[%s1 + $0x1c8] sm:$0xf]
        %v426 = vld [vmem:[%s1 + $0x1cc] sm:$0xf]
        %v427 = vld [vmem:[%s1 + $0x1d0] sm:$0xf]
        %v428 = vld [vmem:[%s1 + $0x1d4] sm:$0xf]
        %v429 = vld [vmem:[%s1 + $0x1d8] sm:$0xf]
        %v430 = vld [vmem:[%s1 + $0x1dc] sm:$0xf]
        %v431 = vld [vmem:[%s1 + $0x1e0] sm:$0xf]
        %v432 = vld [vmem:[%s1 + $0x1e4] sm:$0xf]
        %v433 = vld [vmem:[%s1 + $0x1e8] sm:$0xf]
        %v434 = vld [vmem:[%s1 + $0x1ec] sm:$0xf]
        %v435 = vld [vmem:[%s1 + $0x1f0] sm:$0xf]
        %v436 = vld [vmem:[%s1 + $0x1f4] sm:$0xf]
        %v437 = vld [vmem:[%s1 + $0x1f8] sm:$0xf]
        %v438 = vld [vmem:[%s1 + $0x1fc] sm:$0xf]
        %v567 = vunpack.c.l.b16 %v311
        %v568 = vunpack.c.l.b16 %v312
        %v569 = vunpack.c.l.b16 %v313
        %v570 = vunpack.c.l.b16 %v314
        %v571 = vunpack.c.l.b16 %v315
        %v572 = vunpack.c.l.b16 %v316
        %v573 = vunpack.c.l.b16 %v317
        %v574 = vunpack.c.l.b16 %v318
        %v575 = vunpack.c.l.b16 %v319
        %v576 = vunpack.c.l.b16 %v320
        %v577 = vunpack.c.l.b16 %v321
        %v578 = vunpack.c.l.b16 %v322
        %v579 = vunpack.c.l.b16 %v323
        %v580 = vunpack.c.l.b16 %v324
        %v581 = vunpack.c.l.b16 %v325
        %v582 = vunpack.c.l.b16 %v326
        %v583 = vunpack.c.l.b16 %v327
        %v584 = vunpack.c.l.b16 %v328
        %v585 = vunpack.c.l.b16 %v329
        %v586 = vunpack.c.l.b16 %v330
        %v587 = vunpack.c.l.b16 %v331
        %v588 = vunpack.c.l.b16 %v332
        %v589 = vunpack.c.l.b16 %v333
        %v590 = vunpack.c.l.b16 %v334
        %v591 = vunpack.c.l.b16 %v335
        %v592 = vunpack.c.l.b16 %v336
        %v593 = vunpack.c.l.b16 %v337
        %v594 = vunpack.c.l.b16 %v338
        %v595 = vunpack.c.l.b16 %v339
        %v596 = vunpack.c.l.b16 %v340
        %v597 = vunpack.c.l.b16 %v341
        %v598 = vunpack.c.l.b16 %v342
        %v599 = vunpack.c.l.b16 %v343
        %v600 = vunpack.c.l.b16 %v344
        %v601 = vunpack.c.l.b16 %v345
        %v602 = vunpack.c.l.b16 %v346
        %v603 = vunpack.c.l.b16 %v347
        %v604 = vunpack.c.l.b16 %v348
        %v605 = vunpack.c.l.b16 %v349
        %v606 = vunpack.c.l.b16 %v350
        %v607 = vunpack.c.l.b16 %v351
        %v608 = vunpack.c.l.b16 %v352
        %v609 = vunpack.c.l.b16 %v353
        %v610 = vunpack.c.l.b16 %v354
        %v611 = vunpack.c.l.b16 %v355
        %v612 = vunpack.c.l.b16 %v356
        %v613 = vunpack.c.l.b16 %v357
        %v614 = vunpack.c.l.b16 %v358
        %v615 = vunpack.c.l.b16 %v359
        %v616 = vunpack.c.l.b16 %v360
        %v617 = vunpack.c.l.b16 %v361
        %v618 = vunpack.c.l.b16 %v362
        %v619 = vunpack.c.l.b16 %v363
        %v620 = vunpack.c.l.b16 %v364
        %v621 = vunpack.c.l.b16 %v365
        %v622 = vunpack.c.l.b16 %v366
        %v623 = vunpack.c.l.b16 %v367
        %v624 = vunpack.c.l.b16 %v368
        %v625 = vunpack.c.l.b16 %v369
        %v626 = vunpack.c.l.b16 %v370
        %v627 = vunpack.c.l.b16 %v371
        %v628 = vunpack.c.l.b16 %v372
        %v629 = vunpack.c.l.b16 %v373
        %v630 = vunpack.c.l.b16 %v374
        %v631 = vunpack.c.l.b16 %v375
        %v632 = vunpack.c.l.b16 %v376
        %v633 = vunpack.c.l.b16 %v377
        %v634 = vunpack.c.l.b16 %v378
        %v635 = vunpack.c.l.b16 %v379
        %v636 = vunpack.c.l.b16 %v380
        %v637 = vunpack.c.l.b16 %v381
        %v638 = vunpack.c.l.b16 %v382
        %v639 = vunpack.c.l.b16 %v383
        %v640 = vunpack.c.l.b16 %v384
        %v641 = vunpack.c.l.b16 %v385
        %v642 = vunpack.c.l.b16 %v386
        %v643 = vunpack.c.l.b16 %v387
        %v644 = vunpack.c.l.b16 %v388
        %v645 = vunpack.c.l.b16 %v389
        %v646 = vunpack.c.l.b16 %v390
        %v647 = vunpack.c.l.b16 %v391
        %v648 = vunpack.c.l.b16 %v392
        %v649 = vunpack.c.l.b16 %v393
        %v650 = vunpack.c.l.b16 %v394
        %v651 = vunpack.c.l.b16 %v395
        %v652 = vunpack.c.l.b16 %v396
        %v653 = vunpack.c.l.b16 %v397
        %v654 = vunpack.c.l.b16 %v398
        %v655 = vunpack.c.l.b16 %v399
        %v656 = vunpack.c.l.b16 %v400
        %v657 = vunpack.c.l.b16 %v401
        %v658 = vunpack.c.l.b16 %v402
        %v659 = vunpack.c.l.b16 %v403
        %v660 = vunpack.c.l.b16 %v404
        %v661 = vunpack.c.l.b16 %v405
        %v662 = vunpack.c.l.b16 %v406
        %v663 = vunpack.c.l.b16 %v407
        %v664 = vunpack.c.l.b16 %v408
        %v665 = vunpack.c.l.b16 %v409
        %v666 = vunpack.c.l.b16 %v410
        %v667 = vunpack.c.l.b16 %v411
        %v668 = vunpack.c.l.b16 %v412
        %v669 = vunpack.c.l.b16 %v413
        %v670 = vunpack.c.l.b16 %v414
        %v671 = vunpack.c.l.b16 %v415
        %v672 = vunpack.c.l.b16 %v416
        %v673 = vunpack.c.l.b16 %v417
        %v674 = vunpack.c.l.b16 %v418
        %v675 = vunpack.c.l.b16 %v419
        %v676 = vunpack.c.l.b16 %v420
        %v677 = vunpack.c.l.b16 %v421
        %v678 = vunpack.c.l.b16 %v422
        %v679 = vunpack.c.l.b16 %v423
        %v680 = vunpack.c.l.b16 %v424
        %v681 = vunpack.c.l.b16 %v425
        %v682 = vunpack.c.l.b16 %v426
        %v683 = vunpack.c.l.b16 %v427
        %v684 = vunpack.c.l.b16 %v428
        %v685 = vunpack.c.l.b16 %v429
        %v686 = vunpack.c.l.b16 %v430
        %v687 = vunpack.c.l.b16 %v431
        %v688 = vunpack.c.l.b16 %v432
        %v689 = vunpack.c.l.b16 %v433
        %v690 = vunpack.c.l.b16 %v434
        %v691 = vunpack.c.l.b16 %v435
        %v692 = vunpack.c.l.b16 %v436
        %v693 = vunpack.c.l.b16 %v437
        %v694 = vunpack.c.l.b16 %v438
        %v695 = vpack.c.b16 %v568, %v567
        %v696 = vpack.c.b16 %v570, %v569
        %v697 = vpack.c.b16 %v572, %v571
        %v698 = vpack.c.b16 %v574, %v573
        %v699 = vpack.c.b16 %v576, %v575
        %v700 = vpack.c.b16 %v578, %v577
        %v701 = vpack.c.b16 %v580, %v579
        %v702 = vpack.c.b16 %v582, %v581
        %v703 = vpack.c.b16 %v584, %v583
        %v704 = vpack.c.b16 %v586, %v585
        %v705 = vpack.c.b16 %v588, %v587
        %v706 = vpack.c.b16 %v590, %v589
        %v707 = vpack.c.b16 %v592, %v591
        %v708 = vpack.c.b16 %v594, %v593
        %v709 = vpack.c.b16 %v596, %v595
        %v710 = vpack.c.b16 %v598, %v597
        %v711 = vpack.c.b16 %v600, %v599
        %v712 = vpack.c.b16 %v602, %v601
        %v713 = vpack.c.b16 %v604, %v603
        %v714 = vpack.c.b16 %v606, %v605
        %v715 = vpack.c.b16 %v608, %v607
        %v716 = vpack.c.b16 %v610, %v609
        %v717 = vpack.c.b16 %v612, %v611
        %v718 = vpack.c.b16 %v614, %v613
        %v719 = vpack.c.b16 %v616, %v615
        %v720 = vpack.c.b16 %v618, %v617
        %v721 = vpack.c.b16 %v620, %v619
        %v722 = vpack.c.b16 %v622, %v621
        %v723 = vpack.c.b16 %v624, %v623
        %v724 = vpack.c.b16 %v626, %v625
        %v725 = vpack.c.b16 %v628, %v627
        %v726 = vpack.c.b16 %v630, %v629
        %v727 = vpack.c.b16 %v632, %v631
        %v728 = vpack.c.b16 %v634, %v633
        %v729 = vpack.c.b16 %v636, %v635
        %v730 = vpack.c.b16 %v638, %v637
        %v731 = vpack.c.b16 %v640, %v639
        %v732 = vpack.c.b16 %v642, %v641
        %v733 = vpack.c.b16 %v644, %v643
        %v734 = vpack.c.b16 %v646, %v645
        %v735 = vpack.c.b16 %v648, %v647
        %v736 = vpack.c.b16 %v650, %v649
        %v737 = vpack.c.b16 %v652, %v651
        %v738 = vpack.c.b16 %v654, %v653
        %v739 = vpack.c.b16 %v656, %v655
        %v740 = vpack.c.b16 %v658, %v657
        %v741 = vpack.c.b16 %v660, %v659
        %v742 = vpack.c.b16 %v662, %v661
        %v743 = vpack.c.b16 %v664, %v663
        %v744 = vpack.c.b16 %v666, %v665
        %v745 = vpack.c.b16 %v668, %v667
        %v746 = vpack.c.b16 %v670, %v669
        %v747 = vpack.c.b16 %v672, %v671
        %v748 = vpack.c.b16 %v674, %v673
        %v749 = vpack.c.b16 %v676, %v675
        %v750 = vpack.c.b16 %v678, %v677
        %v751 = vpack.c.b16 %v680, %v679
        %v752 = vpack.c.b16 %v682, %v681
        %v753 = vpack.c.b16 %v684, %v683
        %v754 = vpack.c.b16 %v686, %v685
        %v755 = vpack.c.b16 %v688, %v687
        %v756 = vpack.c.b16 %v690, %v689
        %v757 = vpack.c.b16 %v692, %v691
        %v758 = vpack.c.b16 %v694, %v693
        %823 = vmatprep.subr.bf16.mxu0 0
        %824 = vmatpush1.bf16.msra.mxu0 %v702
        %825 = vmatprep.subr.bf16.mxu0 0
        %826 = vmatpush1.bf16.msra.mxu0 %v701
        %827 = vmatprep.subr.bf16.mxu0 0
        %828 = vmatpush1.bf16.msra.mxu0 %v700
        %829 = vmatprep.subr.bf16.mxu0 0
        %830 = vmatpush1.bf16.msra.mxu0 %v699
        %831 = vmatprep.subr.bf16.mxu0 0
        %832 = vmatpush1.bf16.msra.mxu0 %v698
        %833 = vmatprep.subr.bf16.mxu0 0
        %834 = vmatpush1.bf16.msra.mxu0 %v697
        %835 = vmatprep.subr.bf16.mxu0 0
        %836 = vmatpush1.bf16.msra.mxu0 %v696
        %837 = vmatprep.subr.bf16.mxu0 0
        %838 = vmatpush1.bf16.msra.mxu0 %v695
        %839 = vmatprep.subr.bf16.mxu0 0
        %840 = vmatpush2.bf16.msra.mxu0 %v710
        %841 = vmatprep.subr.bf16.mxu0 0
        %842 = vmatpush2.bf16.msra.mxu0 %v709
        %843 = vmatprep.subr.bf16.mxu0 0
        %844 = vmatpush2.bf16.msra.mxu0 %v708
        %845 = vmatprep.subr.bf16.mxu0 0
        %846 = vmatpush2.bf16.msra.mxu0 %v707
        %847 = vmatprep.subr.bf16.mxu0 0
        %848 = vmatpush2.bf16.msra.mxu0 %v706
        %849 = vmatprep.subr.bf16.mxu0 0
        %850 = vmatpush2.bf16.msra.mxu0 %v705
        %851 = vmatprep.subr.bf16.mxu0 0
        %852 = vmatpush2.bf16.msra.mxu0 %v704
        %853 = vmatprep.subr.bf16.mxu0 0
        %854 = vmatpush2.bf16.msra.mxu0 %v703
        %855 = vmatprep.mubr.bf16.mxu0 %v304
        %856 = vmatmul.mubr.bf16.gmra.mxu0 %v303
        %v857 = vpop.f32.mrf.mxu0
        %v858 = vadd.f32 0.0, %v857
        %v859 = vpop.f32.mrf.mxu0
        %v860 = vpop.f32.mrf.mxu0
        %v861 = vadd.f32 0.0, %v860
        %v862 = vpop.f32.mrf.mxu0
        %863 = vdwg.mxu0
        %864 = vmatprep.subr.bf16.mxu0 0
        %865 = vmatpush1.bf16.msra.mxu0 %v718
        %866 = vmatprep.subr.bf16.mxu0 0
        %867 = vmatpush1.bf16.msra.mxu0 %v717
        %868 = vmatprep.subr.bf16.mxu0 0
        %869 = vmatpush1.bf16.msra.mxu0 %v716
        %870 = vmatprep.subr.bf16.mxu0 0
        %871 = vmatpush1.bf16.msra.mxu0 %v715
        %872 = vmatprep.subr.bf16.mxu0 0
        %873 = vmatpush1.bf16.msra.mxu0 %v714
        %874 = vmatprep.subr.bf16.mxu0 0
        %875 = vmatpush1.bf16.msra.mxu0 %v713
        %876 = vmatprep.subr.bf16.mxu0 0
        %877 = vmatpush1.bf16.msra.mxu0 %v712
        %878 = vmatprep.subr.bf16.mxu0 0
        %879 = vmatpush1.bf16.msra.mxu0 %v711
        %880 = vmatprep.subr.bf16.mxu0 0
        %881 = vmatpush2.bf16.msra.mxu0 %v726
        %882 = vmatprep.subr.bf16.mxu0 0
        %883 = vmatpush2.bf16.msra.mxu0 %v725
        %884 = vmatprep.subr.bf16.mxu0 0
        %885 = vmatpush2.bf16.msra.mxu0 %v724
        %886 = vmatprep.subr.bf16.mxu0 0
        %887 = vmatpush2.bf16.msra.mxu0 %v723
        %888 = vmatprep.subr.bf16.mxu0 0
        %889 = vmatpush2.bf16.msra.mxu0 %v722
        %890 = vmatprep.subr.bf16.mxu0 0
        %891 = vmatpush2.bf16.msra.mxu0 %v721
        %892 = vmatprep.subr.bf16.mxu0 0
        %893 = vmatpush2.bf16.msra.mxu0 %v720
        %894 = vmatprep.subr.bf16.mxu0 0
        %895 = vmatpush2.bf16.msra.mxu0 %v719
        %896 = vmatprep.mubr.bf16.mxu0 %v306
        %897 = vmatmul.mubr.bf16.gmra.mxu0 %v305
        %v898 = vpop.f32.mrf.mxu0
        %v899 = vadd.f32 %v858, %v898
        %v900 = vpop.f32.mrf.mxu0
        %v901 = vpop.f32.mrf.mxu0
        %v902 = vadd.f32 %v861, %v901
        %v903 = vpop.f32.mrf.mxu0
        %904 = vdwg.mxu0
        %905 = vmatprep.subr.bf16.mxu0 0
        %906 = vmatpush1.bf16.msra.mxu0 %v734
        %907 = vmatprep.subr.bf16.mxu0 0
        %908 = vmatpush1.bf16.msra.mxu0 %v733
        %909 = vmatprep.subr.bf16.mxu0 0
        %910 = vmatpush1.bf16.msra.mxu0 %v732
        %911 = vmatprep.subr.bf16.mxu0 0
        %912 = vmatpush1.bf16.msra.mxu0 %v731
        %913 = vmatprep.subr.bf16.mxu0 0
        %914 = vmatpush1.bf16.msra.mxu0 %v730
        %915 = vmatprep.subr.bf16.mxu0 0
        %916 = vmatpush1.bf16.msra.mxu0 %v729
        %917 = vmatprep.subr.bf16.mxu0 0
        %918 = vmatpush1.bf16.msra.mxu0 %v728
        %919 = vmatprep.subr.bf16.mxu0 0
        %920 = vmatpush1.bf16.msra.mxu0 %v727
        %921 = vmatprep.subr.bf16.mxu0 0
        %922 = vmatpush2.bf16.msra.mxu0 %v742
        %923 = vmatprep.subr.bf16.mxu0 0
        %924 = vmatpush2.bf16.msra.mxu0 %v741
        %925 = vmatprep.subr.bf16.mxu0 0
        %926 = vmatpush2.bf16.msra.mxu0 %v740
        %927 = vmatprep.subr.bf16.mxu0 0
        %928 = vmatpush2.bf16.msra.mxu0 %v739
        %929 = vmatprep.subr.bf16.mxu0 0
        %930 = vmatpush2.bf16.msra.mxu0 %v738
        %931 = vmatprep.subr.bf16.mxu0 0
        %932 = vmatpush2.bf16.msra.mxu0 %v737
        %933 = vmatprep.subr.bf16.mxu0 0
        %934 = vmatpush2.bf16.msra.mxu0 %v736
        %935 = vmatprep.subr.bf16.mxu0 0
        %936 = vmatpush2.bf16.msra.mxu0 %v735
        %937 = vmatprep.mubr.bf16.mxu0 %v308
        %938 = vmatmul.mubr.bf16.gmra.mxu0 %v307
        %v939 = vpop.f32.mrf.mxu0
        %v940 = vadd.f32 %v899, %v939
        %v941 = vpop.f32.mrf.mxu0
        %v942 = vpop.f32.mrf.mxu0
        %v943 = vadd.f32 %v902, %v942
        %v944 = vpop.f32.mrf.mxu0
        %945 = vdwg.mxu0
        %946 = vmatprep.subr.bf16.mxu0 0
        %947 = vmatpush1.bf16.msra.mxu0 %v750
        %948 = vmatprep.subr.bf16.mxu0 0
        %949 = vmatpush1.bf16.msra.mxu0 %v749
        %950 = vmatprep.subr.bf16.mxu0 0
        %951 = vmatpush1.bf16.msra.mxu0 %v748
        %952 = vmatprep.subr.bf16.mxu0 0
        %953 = vmatpush1.bf16.msra.mxu0 %v747
        %954 = vmatprep.subr.bf16.mxu0 0
        %955 = vmatpush1.bf16.msra.mxu0 %v746
        %956 = vmatprep.subr.bf16.mxu0 0
        %957 = vmatpush1.bf16.msra.mxu0 %v745
        %958 = vmatprep.subr.bf16.mxu0 0
        %959 = vmatpush1.bf16.msra.mxu0 %v744
        %960 = vmatprep.subr.bf16.mxu0 0
        %961 = vmatpush1.bf16.msra.mxu0 %v743
        %962 = vmatprep.subr.bf16.mxu0 0
        %963 = vmatpush2.bf16.msra.mxu0 %v758
        %964 = vmatprep.subr.bf16.mxu0 0
        %965 = vmatpush2.bf16.msra.mxu0 %v757
        %966 = vmatprep.subr.bf16.mxu0 0
        %967 = vmatpush2.bf16.msra.mxu0 %v756
        %968 = vmatprep.subr.bf16.mxu0 0
        %969 = vmatpush2.bf16.msra.mxu0 %v755
        %970 = vmatprep.subr.bf16.mxu0 0
        %971 = vmatpush2.bf16.msra.mxu0 %v754
        %972 = vmatprep.subr.bf16.mxu0 0
        %973 = vmatpush2.bf16.msra.mxu0 %v753
        %974 = vmatprep.subr.bf16.mxu0 0
        %975 = vmatpush2.bf16.msra.mxu0 %v752
        %976 = vmatprep.subr.bf16.mxu0 0
        %977 = vmatpush2.bf16.msra.mxu0 %v751
        %978 = vmatprep.mubr.bf16.mxu0 %v310
        %979 = vmatmul.mubr.bf16.gmra.mxu0 %v309
        %v980 = vpop.f32.mrf.mxu0
        %v981 = vadd.f32 %v940, %v980
        %v982 = vpop.f32.mrf.mxu0
        %v983 = vpop.f32.mrf.mxu0
        %v984 = vadd.f32 %v943, %v983
        %v985 = vpop.f32.mrf.mxu0
        %986 = vdwg.mxu0
        %v988 = vrot.slane %v981, 1
        %v990 = vadd.f32 %v981, %v988
        %v991 = vrot.slane %v981, 2
        %v993 = vadd.f32 %v990, %v991
        %v994 = vrot.slane %v981, 3
        %v996 = vadd.f32 %v993, %v994
        %v998 = vrot.slane %v984, 1
        %v1000 = vadd.f32 %v984, %v998
        %v1001 = vrot.slane %v984, 2
        %v1003 = vadd.f32 %v1000, %v1001
        %v1004 = vrot.slane %v984, 3
        %v1006 = vadd.f32 %v1003, %v1004
        %v1008 = vrot.slane %v996, 4
        %1009 = vrot.lane.b32.xlu0 %v1008, 32
        %v1010 = vpop.permute.xlu0 %1009
        %1013 = vrot.lane.b32.xlu0 %v1006, 64
        %v1014 = vpop.permute.xlu0 %1013
        %v1016 = vrot.slane %v1006, 4
        %1017 = vrot.lane.b32.xlu0 %v1016, 96
        %v1018 = vpop.permute.xlu0 %1017
        %vm1020 = vcmask 261120
        %v1021 = vsel %vm1020, %v996, %v1010
        %vm1022 = vcmask 523264
        %v1023 = vsel %vm1022, %v1021, %v1014
        %vm1024 = vcmask 785408
        %v1025 = vsel %vm1024, %v1023, %v1018
        %1026 = vst [vmem:[%s135] sm:$0x1] %v1025
        %s1027 = sand.u32 %s71, 1
        %s1028 = scalar_lea.sflag [#allocation3], %s1027
        %s1029 = sand.u32 %s71, 1
        %s1030 = scalar_lea.vmem [#allocation2], %s1029
        // Predicated region
        $region29: #{motion_extractor_forward.3} parent=27 // pred_check
          %p1031 = pneg %p81
        $region30: #{motion_extractor_forward.3} parent=27 // pred_check_branch
          %1033 = sbr.rel (%p1031) target = $region32
        $region31: #{motion_extractor_forward.3} parent=27 // pred_region
          %s1035 = ssub.s32 16, 16
          %1036 = vsyncadd %s1028, %s1035
          %s1037 = smul.addr %s16, 16
          %s1038 = scalar_lea.hbm %s2, %s1037
          %s1040 = sshll.u32 %s1030, 4
          %s1041 = int_to_ptr.vmem [resolvable:$true] %s1040
          %1043 = dma.vmem_to_hbm [thread:$0]  %s1041, 16, %s1038, %s1028
        $region32: #{motion_extractor_forward.3} parent=27 // pred_fallthru
          _
      $region28: #{motion_extractor_forward.3} parent=5 // pred_fallthru
        _
      %p1044 = scmp.le.s32.totalorder 2, %s11
      // Predicated region
      $region33: #{motion_extractor_forward.3} parent=5 // pred_check
        %p1045 = pneg %p1044
      $region34: #{motion_extractor_forward.3} parent=5 // pred_check_branch
        %1047 = sbr.rel (%p1045) target = $region36
      $region35: #{motion_extractor_forward.3} parent=5 // pred_region
        %s1048 = ssub.s32 %s11, 2
        // Predicated region
        $region37: #{motion_extractor_forward.3} parent=35 // pred_check
          %p1049 = pneg %p87
        $region38: #{motion_extractor_forward.3} parent=35 // pred_check_branch
          %1051 = sbr.rel (%p1049) target = $region40
        $region39: #{motion_extractor_forward.3} parent=35 // pred_region
          %s1052 = sand.u32 %s72, 1
          %s1053 = scalar_lea.sflag [#allocation3], %s1052
          %s1054 = sand.u32 %s72, 1
          %s1055 = scalar_lea.vmem [#allocation2], %s1054
          %1056 = dma.done %s1053, 16
        $region40: #{motion_extractor_forward.3} parent=35 // pred_fallthru
          _
      $region36: #{motion_extractor_forward.3} parent=5 // pred_fallthru
        _
    $region6: #{motion_extractor_forward.3} parent=1 // loop_footer
      %s15 = sadd.s32 1, %s11
    $region7: #{motion_extractor_forward.3} parent=1 // loop_footer_branch
      %10 = sbr.rel target = $region3
    $region8: #{motion_extractor_forward.3} parent=1 // loop_exit
      _
    %1057 = vsyncpa [#allocation3], 1
    %s1058 = scalar_lea.sflag [#allocation3], 1
    %1059 = vsyncpa %s1058, 1

</llo_original>
